<compile_context>
chip_gen: v6e
topology: v6e:2x2x1
jax: 0.10.0
libtpu: 0.0.40
codegen_flags: <defaults>
</compile_context>

<pallas_src>
import functools

import numpy as np
import jax
import jax.numpy as jnp
from jax.experimental import pallas as pl
from jax.experimental.pallas import tpu as pltpu

# ---------------- model hyper-parameters (small, consistent with the forward) ----
B = 2                # batch
BP = 8               # batch padded to one sublane tile
C_IN = 3             # image channels
IMG = 16             # image spatial size
KH = KW = 3          # conv kernel
C_MID = 8            # CNN trunk channels
HIDDEN = 32          # hidden_size
EMB = 64             # embedding_dim
T = 8                # question length
VOCAB = 50           # len(vocab)
N_CLASSES = 10       # n_classes
FC1 = 256

HO = WO = IMG - KH + 1            # 14 valid conv output positions per axis
NVALID = HO * WO                  # 196
H4, H8 = 4 * HIDDEN, 8 * HIDDEN   # 128, 256
IMG_LANES = IMG * C_IN            # 48  -> lanes = (x, c)
IMG_ROWS = B * IMG                # 32  -> rows  = (b, y)
CONV_LANES = WO * C_MID           # 112 -> lanes = (xo, m)

# ---------------- packed operand layouts --------------------------------------
W_SLAB_LANES = 256
OUT_LANES = 128

_W_ENTRIES = (
    ("conv_w", KH * IMG_LANES, CONV_LANES),  # banded conv weights, stacked over dy
    ("proj_w", CONV_LANES, HIDDEN),          # pool (1/196) folded in, tiled over xo
    ("emb",    VOCAB, EMB),
    ("w_ih",   EMB, H8),                     # fwd|bwd input projections fused
    ("w_hh",   HIDDEN, H4),
    ("fc1_w",  3 * HIDDEN, FC1),
    ("fc2_w",  FC1, OUT_LANES),              # lane-padded to 128 classes
    ("conv_b", 1, CONV_LANES),
    ("proj_b", 1, HIDDEN),
    ("b_ih",   1, H8),                       # (b_ih + b_hh), fwd|bwd fused
    ("ln_g",   1, 2 * HIDDEN),
    ("ln_b",   1, 2 * HIDDEN),
    ("fc1_b",  1, FC1),
    ("fc2_b",  1, OUT_LANES),
)
W_OFF = {}
_row = 0
for _name, _rows, _cols in _W_ENTRIES:
    W_OFF[_name] = (_row, _rows, _cols)
    _row += -(-_rows // 8) * 8               # keep every block sublane aligned
W_SLAB_ROWS = _row                           # 816

ACT_LANES = 128
ACT_IMG_ROWS = IMG_ROWS + 8                  # 8 zero rows of headroom for dy shifts
ACT_IDS_ROW0 = ACT_IMG_ROWS                  # 40
ACT_ROWS = ACT_IDS_ROW0 + T * BP             # 104


# -------------------------- fused Pallas kernel --------------------------

def vqa_fused_kernel(w_ref, act_ref, out_ref):
    """Whole VQA forward in VMEM.  w_ref: (816, 256) packed weights,
    act_ref: (104, 128) packed activations, out_ref: (8, 128)."""
    f32 = jnp.float32
    dot = functools.partial(jnp.dot, preferred_element_type=f32)
    H = HIDDEN

    def w(name):
        r0, rows, cols = W_OFF[name]
        return w_ref[r0:r0 + rows, 0:cols]

    # ---- surrogate CNN encoder: valid 3x3 conv as 3 row-shifted banded matmuls ----
    rc = W_OFF["conv_w"][0]
    feat = dot(act_ref[0:IMG_ROWS, 0:IMG_LANES],
               w_ref[rc:rc + IMG_LANES, 0:CONV_LANES])
    for dy in range(1, KH):
        feat = feat + dot(act_ref[dy:dy + IMG_ROWS, 0:IMG_LANES],
                          w_ref[rc + dy * IMG_LANES:rc + (dy + 1) * IMG_LANES,
                                0:CONV_LANES])
    feat = jnp.maximum(feat + w("conv_b"), 0.0)                  # (32, 112)

    # mask rows whose output y-index is invalid (yo >= 14), then per-image sum;
    # the 1/196 average and the xo lane-group reduction are folded into proj_w.
    row = jax.lax.broadcasted_iota(jnp.int32, (IMG_ROWS, CONV_LANES), 0)
    feat = jnp.where((row & (IMG - 1)) < HO, feat, 0.0)
    pooled = jnp.concatenate(
        [jnp.sum(feat[b * IMG:(b + 1) * IMG, :], axis=0, keepdims=True)
         for b in range(B)]
        + [jnp.zeros((BP - B, CONV_LANES), f32)], axis=0)        # (8, 112)
    img_feat = dot(pooled, w("proj_w")) + w("proj_b")            # (8, HIDDEN)

    # ---- embedding lookup as one-hot matmul (ids travel as f32 in the act slab) ----
    ids = act_ref[ACT_IDS_ROW0:ACT_IDS_ROW0 + T * BP, 0:1]       # (64, 1), row = t*8+b
    vocab_iota = jax.lax.broadcasted_iota(jnp.int32, (T * BP, VOCAB), 1).astype(f32)
    onehot = (ids == vocab_iota).astype(f32)                     # (64, 50)
    emb_all = dot(onehot, w("emb"))                              # (64, EMB)

    # hoisted LSTM input projection, fwd+bwd fused to 8H = 256 lanes
    gates_x = dot(emb_all, w("w_ih")) + w("b_ih")                # (64, 256)

    # ---- forward LSTM recurrence (only h @ W_hh stays on the serial path) ----
    w_hh = w("w_hh").astype(jnp.bfloat16)                        # bf16 MXU operand
    h = jnp.zeros((BP, H), f32)
    c = jnp.zeros((BP, H), f32)
    for t in range(T):                                           # static unroll, T=8
        g = (gates_x[t * BP:(t + 1) * BP, 0:H4]                  # tile-aligned slice
             + dot(h.astype(jnp.bfloat16), w_hh))                # (8, 128) gates i|f|g|o
        sg = jax.nn.sigmoid(g)                                   # one EUP pass
        th = jnp.tanh(g)                                         # one EUP pass
        c = sg[:, H:2 * H] * c + sg[:, 0:H] * th[:, 2 * H:3 * H]
        h = sg[:, 3 * H:4 * H] * jnp.tanh(c)

    # ---- backward direction: only lstm_out[:, -1, H:] is consumed and the initial
    # state is zero, so the W_hh term vanishes and one exact cell step suffices.
    gb = gates_x[(T - 1) * BP:T * BP, H4:H8]                     # (8, 128)
    sb = jax.nn.sigmoid(gb)
    tb = jnp.tanh(gb)
    h_b = sb[:, 3 * H:4 * H] * jnp.tanh(sb[:, 0:H] * tb[:, 2 * H:3 * H])

    # ---- LayerNorm over concat([h, h_b]) without a lane concat ----
    ln_g, ln_b = w("ln_g"), w("ln_b")
    inv_n = 1.0 / float(2 * H)
    mu = (jnp.sum(h, axis=1, keepdims=True)
          + jnp.sum(h_b, axis=1, keepdims=True)) * inv_n
    dh, db = h - mu, h_b - mu
    var = (jnp.sum(dh * dh, axis=1, keepdims=True)
           + jnp.sum(db * db, axis=1, keepdims=True)) * inv_n
    rstd = jax.lax.rsqrt(var + 1e-5)
    ln_f = dh * rstd * ln_g[:, 0:H] + ln_b[:, 0:H]
    ln_r = db * rstd * ln_g[:, H:2 * H] + ln_b[:, H:2 * H]

    # ---- MLP head: fc1 over [img_feat | ln_f | ln_r] as a sum of 3 matmuls ----
    r1 = W_OFF["fc1_w"][0]
    x = (dot(img_feat, w_ref[r1:r1 + H, 0:FC1])
         + dot(ln_f, w_ref[r1 + H:r1 + 2 * H, 0:FC1])
         + dot(ln_r, w_ref[r1 + 2 * H:r1 + 3 * H, 0:FC1])
         + w("fc1_b"))
    x = jnp.maximum(x, 0.0)
    out_ref[...] = dot(x, w("fc2_w")) + w("fc2_b")               # (8, 128) lane-dense


# -------------------------- offline weight packing --------------------------

def pack_params(params):
    """One-time (offline) repack of the raw parameters into a single f32 slab."""
    # banded conv weights: W[dy, x*3+c, xo*8+m] = conv_w[(dy*3+dx)*3+c, m], dx = x-xo
    cw = params["conv_w"].reshape(KH, KW, C_IN, C_MID)
    sel = np.zeros((KW, IMG, WO), np.float32)
    for dx in range(KW):
        for xo in range(WO):
            sel[dx, xo + dx, xo] = 1.0
    conv_band = jnp.einsum("axo,dacm->dxcom", jnp.asarray(sel), cw)
    conv_band = conv_band.reshape(KH * IMG_LANES, CONV_LANES)

    tensors = {
        "conv_w": conv_band,
        "proj_w": jnp.tile(params["proj_w"], (WO, 1)) / float(NVALID),
        "emb": params["emb_table"],
        "w_ih": jnp.concatenate([params["w_ih_f"], params["w_ih_b"]], axis=1),
        "w_hh": params["w_hh_f"],
        "fc1_w": params["fc1_w"],
        "fc2_w": jnp.pad(params["fc2_w"], ((0, 0), (0, OUT_LANES - N_CLASSES))),
        "conv_b": jnp.tile(params["conv_b"], (1, WO)),
        "proj_b": params["proj_b"],
        "b_ih": jnp.concatenate([params["b_f"], params["b_b"]], axis=1),
        "ln_g": params["ln_g"],
        "ln_b": params["ln_b"],
        "fc1_b": params["fc1_b"],
        "fc2_b": jnp.pad(params["fc2_b"], ((0, 0), (0, OUT_LANES - N_CLASSES))),
    }
    slab = jnp.zeros((W_SLAB_ROWS, W_SLAB_LANES), jnp.float32)
    for name, (r0, rows, cols) in W_OFF.items():
        t = tensors[name].astype(jnp.float32)
        assert t.shape == (rows, cols), (name, t.shape, (rows, cols))
        slab = slab.at[r0:r0 + rows, 0:cols].set(t)
    return slab


# -------------------------- JAX glue / wrapper --------------------------

@jax.jit
def vqa_forward(w_slab, img_nchw, text):
    """Per-call wrapper: packs the small activation slab and runs the fused kernel."""
    # image -> rows=(b, y), lanes=(x, c); 8 zero rows of headroom for the dy shifts
    img2d = jnp.transpose(img_nchw, (0, 2, 3, 1)).astype(jnp.float32)
    img2d = img2d.reshape(IMG_ROWS, IMG_LANES)
    img_blk = jnp.pad(img2d, ((0, ACT_IMG_ROWS - IMG_ROWS),
                              (0, ACT_LANES - IMG_LANES)))
    # token ids, time-major with batch padded to 8, carried as exact small floats
    ids = jnp.pad(jnp.transpose(text).astype(jnp.float32), ((0, 0), (0, BP - B)))
    ids_blk = jnp.pad(ids.reshape(T * BP, 1), ((0, 0), (0, ACT_LANES - 1)))
    act = jnp.concatenate([img_blk, ids_blk], axis=0)            # (104, 128)

    out = pl.pallas_call(
        vqa_fused_kernel,
        out_shape=jax.ShapeDtypeStruct((BP, OUT_LANES), jnp.float32),
        in_specs=[pl.BlockSpec(memory_space=pltpu.MemorySpace.VMEM),
                  pl.BlockSpec(memory_space=pltpu.MemorySpace.VMEM)],
        out_specs=pl.BlockSpec(memory_space=pltpu.MemorySpace.VMEM),
    )(w_slab, act)
    return out[:B, :N_CLASSES]


def init_params(key):
    keys = jax.random.split(key, 12)
    scale = 0.1

    def nrm(k, shape):
        return jax.random.normal(k, shape, jnp.float32) * scale

    return {
        # surrogate CNN image encoder
        "conv_w": nrm(keys[0], (KH * KW * C_IN, C_MID)),
        "conv_b": nrm(keys[1], (1, C_MID)),
        "proj_w": nrm(keys[2], (C_MID, HIDDEN)),
        "proj_b": nrm(keys[3], (1, HIDDEN)),
        # embedding
        "emb_table": nrm(keys[4], (VOCAB, EMB)),
        # bidirectional LSTM (1 layer); biases are b_ih + b_hh combined.
        # TODO(synk): when porting real PyTorch weights, sum b_ih + b_hh here.
        "w_ih_f": nrm(keys[5], (EMB, 4 * HIDDEN)),
        "w_hh_f": nrm(keys[6], (HIDDEN, 4 * HIDDEN)),
        "b_f": nrm(keys[7], (1, 4 * HIDDEN)),
        "w_ih_b": nrm(keys[8], (EMB, 4 * HIDDEN)),
        "b_b": nrm(keys[9], (1, 4 * HIDDEN)),
        # layernorm over 2*HIDDEN
        "ln_g": jnp.ones((1, 2 * HIDDEN), jnp.float32),
        "ln_b": jnp.zeros((1, 2 * HIDDEN), jnp.float32),
        # MLP head
        "fc1_w": nrm(keys[10], (3 * HIDDEN, FC1)),
        "fc1_b": jnp.zeros((1, FC1), jnp.float32),
        "fc2_w": nrm(keys[11], (FC1, N_CLASSES)),
        "fc2_b": jnp.zeros((1, N_CLASSES), jnp.float32),
    }


@jax.jit
def forward_reference(params, img_nchw, text):
    """Pure-JAX f32 reference with the module's math (correctness check only)."""
    img = jnp.transpose(img_nchw, (0, 2, 3, 1)).astype(jnp.float32)
    cols = [img[:, dy:dy + HO, dx:dx + WO, :]
            for dy in range(KH) for dx in range(KW)]
    patches = jnp.concatenate(cols, axis=-1).reshape(B, NVALID, KH * KW * C_IN)
    feat = jnp.maximum(
        jnp.einsum("bnk,kc->bnc", patches, params["conv_w"]) + params["conv_b"], 0.0)
    img_feat = jnp.mean(feat, axis=1) @ params["proj_w"] + params["proj_b"]

    emb = jnp.take(params["emb_table"], text, axis=0)            # (B, T, EMB)
    h = jnp.zeros((B, HIDDEN), jnp.float32)
    c = jnp.zeros((B, HIDDEN), jnp.float32)
    for t in range(T):
        g = emb[:, t] @ params["w_ih_f"] + h @ params["w_hh_f"] + params["b_f"]
        i_g = jax.nn.sigmoid(g[:, :HIDDEN])
        f_g = jax.nn.sigmoid(g[:, HIDDEN:2 * HIDDEN])
        g_g = jnp.tanh(g[:, 2 * HIDDEN:3 * HIDDEN])
        o_g = jax.nn.sigmoid(g[:, 3 * HIDDEN:])
        c = f_g * c + i_g * g_g
        h = o_g * jnp.tanh(c)
    gb = emb[:, -1] @ params["w_ih_b"] + params["b_b"]
    h_b = jax.nn.sigmoid(gb[:, 3 * HIDDEN:]) * jnp.tanh(
        jax.nn.sigmoid(gb[:, :HIDDEN]) * jnp.tanh(gb[:, 2 * HIDDEN:3 * HIDDEN]))

    lstm_last = jnp.concatenate([h, h_b], axis=1)
    mu = jnp.mean(lstm_last, axis=1, keepdims=True)
    var = jnp.mean(jnp.square(lstm_last - mu), axis=1, keepdims=True)
    ln = (lstm_last - mu) * jax.lax.rsqrt(var + 1e-5) * params["ln_g"] + params["ln_b"]
    combined = jnp.concatenate([img_feat, ln], axis=1)
    x = jnp.maximum(combined @ params["fc1_w"] + params["fc1_b"], 0.0)
    return x @ params["fc2_w"] + params["fc2_b"]


if __name__ == "__main__":
    key = jax.random.PRNGKey(0)
    pkey, ikey, tkey = jax.random.split(key, 3)
    params = init_params(pkey)

    img = jax.random.normal(ikey, (B, C_IN, IMG, IMG), jnp.float32)   # NCHW like PyTorch
    text = jax.random.randint(tkey, (B, T), 0, VOCAB, dtype=jnp.int32)

    w_slab = jax.block_until_ready(pack_params(params))               # one-time repack
    logits = jax.block_until_ready(vqa_forward(w_slab, img, text))

    ref = forward_reference(params, img, text)
    assert logits.shape == (B, N_CLASSES), logits.shape
    err = float(jnp.max(jnp.abs(logits - ref)))
    assert err < 3e-2, f"max abs err vs reference: {err}"
    print("KERNEL_OK")
</pallas_src>

<mosaic_0001>
module attributes {stable_mosaic.version = 11 : i64} {
  func.func @vqa_fused_kernel(%arg0: memref<816x256xf32, #tpu.memory_space<vmem>>, %arg1: memref<104x128xf32, #tpu.memory_space<vmem>>, %arg2: memref<8x128xf32, #tpu.memory_space<vmem>>) attributes {dimension_semantics = [], scalar_prefetch = 0 : i64, scratch_operands = 0 : i64, tpu.core_type = #tpu.core_type<tc>} {
    %c0 = arith.constant 0 : index
    %c0_0 = arith.constant 0 : index
    %0 = vector.load %arg1[%c0, %c0_0] : memref<104x128xf32, #tpu.memory_space<vmem>>, vector<32x48xf32>
    %c0_1 = arith.constant 0 : index
    %c0_2 = arith.constant 0 : index
    %1 = vector.load %arg0[%c0_1, %c0_2] : memref<816x256xf32, #tpu.memory_space<vmem>>, vector<48x112xf32>
    %cst = arith.constant dense<0.000000e+00> : vector<32x112xf32>
    %2 = tpu.matmul %0, %1, %cst {dimension_numbers = #tpu.dot_dimension_numbers<[1], [0], [0], [1], [0, 0, 1, 1], [], []>} : vector<32x48xf32>, vector<48x112xf32>, vector<32x112xf32> -> vector<32x112xf32>
    %c1 = arith.constant 1 : index
    %c0_3 = arith.constant 0 : index
    %3 = vector.load %arg1[%c1, %c0_3] : memref<104x128xf32, #tpu.memory_space<vmem>>, vector<32x48xf32>
    %c48 = arith.constant 48 : index
    %c0_4 = arith.constant 0 : index
    %4 = vector.load %arg0[%c48, %c0_4] : memref<816x256xf32, #tpu.memory_space<vmem>>, vector<48x112xf32>
    %cst_5 = arith.constant dense<0.000000e+00> : vector<32x112xf32>
    %5 = tpu.matmul %3, %4, %cst_5 {dimension_numbers = #tpu.dot_dimension_numbers<[1], [0], [0], [1], [0, 0, 1, 1], [], []>} : vector<32x48xf32>, vector<48x112xf32>, vector<32x112xf32> -> vector<32x112xf32>
    %6 = arith.addf %2, %5 : vector<32x112xf32>
    %c2 = arith.constant 2 : index
    %c0_6 = arith.constant 0 : index
    %7 = vector.load %arg1[%c2, %c0_6] : memref<104x128xf32, #tpu.memory_space<vmem>>, vector<32x48xf32>
    %c96 = arith.constant 96 : index
    %c0_7 = arith.constant 0 : index
    %8 = vector.load %arg0[%c96, %c0_7] : memref<816x256xf32, #tpu.memory_space<vmem>>, vector<48x112xf32>
    %cst_8 = arith.constant dense<0.000000e+00> : vector<32x112xf32>
    %9 = tpu.matmul %7, %8, %cst_8 {dimension_numbers = #tpu.dot_dimension_numbers<[1], [0], [0], [1], [0, 0, 1, 1], [], []>} : vector<32x48xf32>, vector<48x112xf32>, vector<32x112xf32> -> vector<32x112xf32>
    %10 = arith.addf %6, %9 : vector<32x112xf32>
    %c760 = arith.constant 760 : index
    %c0_9 = arith.constant 0 : index
    %11 = vector.load %arg0[%c760, %c0_9] : memref<816x256xf32, #tpu.memory_space<vmem>>, vector<1x112xf32>
    %12 = vector.broadcast %11 : vector<1x112xf32> to vector<32x112xf32>
    %13 = arith.addf %10, %12 : vector<32x112xf32>
    %cst_10 = arith.constant 0.000000e+00 : f32
    %14 = vector.broadcast %cst_10 : f32 to vector<32x112xf32>
    %15 = arith.maximumf %13, %14 : vector<32x112xf32>
    %16 = tpu.iota {dimensions = array<i32: 0>} : vector<32x112xi32>
    %c15_i32 = arith.constant 15 : i32
    %17 = vector.broadcast %c15_i32 : i32 to vector<32x112xi32>
    %18 = arith.andi %16, %17 : vector<32x112xi32>
    %c14_i32 = arith.constant 14 : i32
    %19 = vector.broadcast %c14_i32 : i32 to vector<32x112xi32>
    %20 = arith.cmpi slt, %18, %19 : vector<32x112xi32>
    %cst_11 = arith.constant 0.000000e+00 : f32
    %21 = vector.broadcast %cst_11 : f32 to vector<32x112xf32>
    %22 = arith.select %20, %15, %21 : vector<32x112xi1>, vector<32x112xf32>
    %23 = vector.extract_strided_slice %22 {offsets = [0, 0], sizes = [16, 112], strides = [1, 1]} : vector<32x112xf32> to vector<16x112xf32>
    %cst_12 = arith.constant dense<0.000000e+00> : vector<112xf32>
    %24 = vector.multi_reduction <add>, %23, %cst_12 [0] : vector<16x112xf32> to vector<112xf32>
    %25 = vector.shape_cast %24 : vector<112xf32> to vector<1x112xf32>
    %26 = vector.extract_strided_slice %22 {offsets = [16, 0], sizes = [16, 112], strides = [1, 1]} : vector<32x112xf32> to vector<16x112xf32>
    %cst_13 = arith.constant dense<0.000000e+00> : vector<112xf32>
    %27 = vector.multi_reduction <add>, %26, %cst_13 [0] : vector<16x112xf32> to vector<112xf32>
    %28 = vector.shape_cast %27 : vector<112xf32> to vector<1x112xf32>
    %cst_14 = arith.constant 0.000000e+00 : f32
    %29 = vector.broadcast %cst_14 : f32 to vector<6x112xf32>
    %30 = tpu.concatenate %25, %28, %29 in 0 : vector<1x112xf32>, vector<1x112xf32>, vector<6x112xf32> -> vector<8x112xf32>
    %c144 = arith.constant 144 : index
    %c0_15 = arith.constant 0 : index
    %31 = vector.load %arg0[%c144, %c0_15] : memref<816x256xf32, #tpu.memory_space<vmem>>, vector<112x32xf32>
    %cst_16 = arith.constant dense<0.000000e+00> : vector<8x32xf32>
    %32 = tpu.matmul %30, %31, %cst_16 {dimension_numbers = #tpu.dot_dimension_numbers<[1], [0], [0], [1], [0, 0, 1, 1], [], []>} : vector<8x112xf32>, vector<112x32xf32>, vector<8x32xf32> -> vector<8x32xf32>
    %c768 = arith.constant 768 : index
    %c0_17 = arith.constant 0 : index
    %33 = vector.load %arg0[%c768, %c0_17] : memref<816x256xf32, #tpu.memory_space<vmem>>, vector<1x32xf32>
    %34 = vector.broadcast %33 : vector<1x32xf32> to vector<8x32xf32>
    %35 = arith.addf %32, %34 : vector<8x32xf32>
    %c40 = arith.constant 40 : index
    %c0_18 = arith.constant 0 : index
    %36 = vector.load %arg1[%c40, %c0_18] : memref<104x128xf32, #tpu.memory_space<vmem>>, vector<64x1xf32>
    %37 = tpu.iota {dimensions = array<i32: 1>} : vector<64x50xi32>
    %38 = arith.sitofp %37 : vector<64x50xi32> to vector<64x50xf32>
    %39 = vector.broadcast %36 : vector<64x1xf32> to vector<64x50xf32>
    %40 = arith.cmpf oeq, %39, %38 : vector<64x50xf32>
    %41 = arith.extui %40 : vector<64x50xi1> to vector<64x50xi32>
    %42 = arith.sitofp %41 : vector<64x50xi32> to vector<64x50xf32>
    %c256 = arith.constant 256 : index
    %c0_19 = arith.constant 0 : index
    %43 = vector.load %arg0[%c256, %c0_19] : memref<816x256xf32, #tpu.memory_space<vmem>>, vector<50x64xf32>
    %cst_20 = arith.constant dense<0.000000e+00> : vector<64x64xf32>
    %44 = tpu.matmul %42, %43, %cst_20 {dimension_numbers = #tpu.dot_dimension_numbers<[1], [0], [0], [1], [0, 0, 1, 1], [], []>} : vector<64x50xf32>, vector<50x64xf32>, vector<64x64xf32> -> vector<64x64xf32>
    %c312 = arith.constant 312 : index
    %c0_21 = arith.constant 0 : index
    %45 = vector.load %arg0[%c312, %c0_21] : memref<816x256xf32, #tpu.memory_space<vmem>>, vector<64x256xf32>
    %cst_22 = arith.constant dense<0.000000e+00> : vector<64x256xf32>
    %46 = tpu.matmul %44, %45, %cst_22 {dimension_numbers = #tpu.dot_dimension_numbers<[1], [0], [0], [1], [0, 0, 1, 1], [], []>} : vector<64x64xf32>, vector<64x256xf32>, vector<64x256xf32> -> vector<64x256xf32>
    %c776 = arith.constant 776 : index
    %c0_23 = arith.constant 0 : index
    %47 = vector.load %arg0[%c776, %c0_23] : memref<816x256xf32, #tpu.memory_space<vmem>>, vector<1x256xf32>
    %48 = vector.broadcast %47 : vector<1x256xf32> to vector<64x256xf32>
    %49 = arith.addf %46, %48 : vector<64x256xf32>
    %c376 = arith.constant 376 : index
    %c0_24 = arith.constant 0 : index
    %50 = vector.load %arg0[%c376, %c0_24] : memref<816x256xf32, #tpu.memory_space<vmem>>, vector<32x128xf32>
    %51 = arith.truncf %50 : vector<32x128xf32> to vector<32x128xbf16>
    %cst_25 = arith.constant 0.000000e+00 : f32
    %52 = vector.broadcast %cst_25 : f32 to vector<8x32xf32>
    %cst_26 = arith.constant 0.000000e+00 : f32
    %53 = vector.broadcast %cst_26 : f32 to vector<8x32xf32>
    %54 = vector.extract_strided_slice %49 {offsets = [0, 0], sizes = [8, 128], strides = [1, 1]} : vector<64x256xf32> to vector<8x128xf32>
    %55 = arith.truncf %52 : vector<8x32xf32> to vector<8x32xbf16>
    %cst_27 = arith.constant dense<0.000000e+00> : vector<8x128xf32>
    %56 = tpu.matmul %55, %51, %cst_27 {dimension_numbers = #tpu.dot_dimension_numbers<[1], [0], [0], [1], [0, 0, 1, 1], [], []>} : vector<8x32xbf16>, vector<32x128xbf16>, vector<8x128xf32> -> vector<8x128xf32>
    %57 = arith.addf %54, %56 : vector<8x128xf32>
    %58 = arith.negf %57 : vector<8x128xf32>
    %59 = math.exp %58 : vector<8x128xf32>
    %cst_28 = arith.constant 1.000000e+00 : f32
    %60 = vector.broadcast %cst_28 : f32 to vector<8x128xf32>
    %61 = arith.addf %60, %59 : vector<8x128xf32>
    %62 = arith.divf %60, %61 : vector<8x128xf32>
    %63 = math.tanh %57 : vector<8x128xf32>
    %64 = vector.extract_strided_slice %62 {offsets = [0, 32], sizes = [8, 32], strides = [1, 1]} : vector<8x128xf32> to vector<8x32xf32>
    %65 = arith.mulf %64, %53 : vector<8x32xf32>
    %66 = vector.extract_strided_slice %62 {offsets = [0, 0], sizes = [8, 32], strides = [1, 1]} : vector<8x128xf32> to vector<8x32xf32>
    %67 = vector.extract_strided_slice %63 {offsets = [0, 64], sizes = [8, 32], strides = [1, 1]} : vector<8x128xf32> to vector<8x32xf32>
    %68 = arith.mulf %66, %67 : vector<8x32xf32>
    %69 = arith.addf %65, %68 : vector<8x32xf32>
    %70 = vector.extract_strided_slice %62 {offsets = [0, 96], sizes = [8, 32], strides = [1, 1]} : vector<8x128xf32> to vector<8x32xf32>
    %71 = math.tanh %69 : vector<8x32xf32>
    %72 = arith.mulf %70, %71 : vector<8x32xf32>
    %73 = vector.extract_strided_slice %49 {offsets = [8, 0], sizes = [8, 128], strides = [1, 1]} : vector<64x256xf32> to vector<8x128xf32>
    %74 = arith.truncf %72 : vector<8x32xf32> to vector<8x32xbf16>
    %cst_29 = arith.constant dense<0.000000e+00> : vector<8x128xf32>
    %75 = tpu.matmul %74, %51, %cst_29 {dimension_numbers = #tpu.dot_dimension_numbers<[1], [0], [0], [1], [0, 0, 1, 1], [], []>} : vector<8x32xbf16>, vector<32x128xbf16>, vector<8x128xf32> -> vector<8x128xf32>
    %76 = arith.addf %73, %75 : vector<8x128xf32>
    %77 = arith.negf %76 : vector<8x128xf32>
    %78 = math.exp %77 : vector<8x128xf32>
    %cst_30 = arith.constant 1.000000e+00 : f32
    %79 = vector.broadcast %cst_30 : f32 to vector<8x128xf32>
    %80 = arith.addf %79, %78 : vector<8x128xf32>
    %81 = arith.divf %79, %80 : vector<8x128xf32>
    %82 = math.tanh %76 : vector<8x128xf32>
    %83 = vector.extract_strided_slice %81 {offsets = [0, 32], sizes = [8, 32], strides = [1, 1]} : vector<8x128xf32> to vector<8x32xf32>
    %84 = arith.mulf %83, %69 : vector<8x32xf32>
    %85 = vector.extract_strided_slice %81 {offsets = [0, 0], sizes = [8, 32], strides = [1, 1]} : vector<8x128xf32> to vector<8x32xf32>
    %86 = vector.extract_strided_slice %82 {offsets = [0, 64], sizes = [8, 32], strides = [1, 1]} : vector<8x128xf32> to vector<8x32xf32>
    %87 = arith.mulf %85, %86 : vector<8x32xf32>
    %88 = arith.addf %84, %87 : vector<8x32xf32>
    %89 = vector.extract_strided_slice %81 {offsets = [0, 96], sizes = [8, 32], strides = [1, 1]} : vector<8x128xf32> to vector<8x32xf32>
    %90 = math.tanh %88 : vector<8x32xf32>
    %91 = arith.mulf %89, %90 : vector<8x32xf32>
    %92 = vector.extract_strided_slice %49 {offsets = [16, 0], sizes = [8, 128], strides = [1, 1]} : vector<64x256xf32> to vector<8x128xf32>
    %93 = arith.truncf %91 : vector<8x32xf32> to vector<8x32xbf16>
    %cst_31 = arith.constant dense<0.000000e+00> : vector<8x128xf32>
    %94 = tpu.matmul %93, %51, %cst_31 {dimension_numbers = #tpu.dot_dimension_numbers<[1], [0], [0], [1], [0, 0, 1, 1], [], []>} : vector<8x32xbf16>, vector<32x128xbf16>, vector<8x128xf32> -> vector<8x128xf32>
    %95 = arith.addf %92, %94 : vector<8x128xf32>
    %96 = arith.negf %95 : vector<8x128xf32>
    %97 = math.exp %96 : vector<8x128xf32>
    %cst_32 = arith.constant 1.000000e+00 : f32
    %98 = vector.broadcast %cst_32 : f32 to vector<8x128xf32>
    %99 = arith.addf %98, %97 : vector<8x128xf32>
    %100 = arith.divf %98, %99 : vector<8x128xf32>
    %101 = math.tanh %95 : vector<8x128xf32>
    %102 = vector.extract_strided_slice %100 {offsets = [0, 32], sizes = [8, 32], strides = [1, 1]} : vector<8x128xf32> to vector<8x32xf32>
    %103 = arith.mulf %102, %88 : vector<8x32xf32>
    %104 = vector.extract_strided_slice %100 {offsets = [0, 0], sizes = [8, 32], strides = [1, 1]} : vector<8x128xf32> to vector<8x32xf32>
    %105 = vector.extract_strided_slice %101 {offsets = [0, 64], sizes = [8, 32], strides = [1, 1]} : vector<8x128xf32> to vector<8x32xf32>
    %106 = arith.mulf %104, %105 : vector<8x32xf32>
    %107 = arith.addf %103, %106 : vector<8x32xf32>
    %108 = vector.extract_strided_slice %100 {offsets = [0, 96], sizes = [8, 32], strides = [1, 1]} : vector<8x128xf32> to vector<8x32xf32>
    %109 = math.tanh %107 : vector<8x32xf32>
    %110 = arith.mulf %108, %109 : vector<8x32xf32>
    %111 = vector.extract_strided_slice %49 {offsets = [24, 0], sizes = [8, 128], strides = [1, 1]} : vector<64x256xf32> to vector<8x128xf32>
    %112 = arith.truncf %110 : vector<8x32xf32> to vector<8x32xbf16>
    %cst_33 = arith.constant dense<0.000000e+00> : vector<8x128xf32>
    %113 = tpu.matmul %112, %51, %cst_33 {dimension_numbers = #tpu.dot_dimension_numbers<[1], [0], [0], [1], [0, 0, 1, 1], [], []>} : vector<8x32xbf16>, vector<32x128xbf16>, vector<8x128xf32> -> vector<8x128xf32>
    %114 = arith.addf %111, %113 : vector<8x128xf32>
    %115 = arith.negf %114 : vector<8x128xf32>
    %116 = math.exp %115 : vector<8x128xf32>
    %cst_34 = arith.constant 1.000000e+00 : f32
    %117 = vector.broadcast %cst_34 : f32 to vector<8x128xf32>
    %118 = arith.addf %117, %116 : vector<8x128xf32>
    %119 = arith.divf %117, %118 : vector<8x128xf32>
    %120 = math.tanh %114 : vector<8x128xf32>
    %121 = vector.extract_strided_slice %119 {offsets = [0, 32], sizes = [8, 32], strides = [1, 1]} : vector<8x128xf32> to vector<8x32xf32>
    %122 = arith.mulf %121, %107 : vector<8x32xf32>
    %123 = vector.extract_strided_slice %119 {offsets = [0, 0], sizes = [8, 32], strides = [1, 1]} : vector<8x128xf32> to vector<8x32xf32>
    %124 = vector.extract_strided_slice %120 {offsets = [0, 64], sizes = [8, 32], strides = [1, 1]} : vector<8x128xf32> to vector<8x32xf32>
    %125 = arith.mulf %123, %124 : vector<8x32xf32>
    %126 = arith.addf %122, %125 : vector<8x32xf32>
    %127 = vector.extract_strided_slice %119 {offsets = [0, 96], sizes = [8, 32], strides = [1, 1]} : vector<8x128xf32> to vector<8x32xf32>
    %128 = math.tanh %126 : vector<8x32xf32>
    %129 = arith.mulf %127, %128 : vector<8x32xf32>
    %130 = vector.extract_strided_slice %49 {offsets = [32, 0], sizes = [8, 128], strides = [1, 1]} : vector<64x256xf32> to vector<8x128xf32>
    %131 = arith.truncf %129 : vector<8x32xf32> to vector<8x32xbf16>
    %cst_35 = arith.constant dense<0.000000e+00> : vector<8x128xf32>
    %132 = tpu.matmul %131, %51, %cst_35 {dimension_numbers = #tpu.dot_dimension_numbers<[1], [0], [0], [1], [0, 0, 1, 1], [], []>} : vector<8x32xbf16>, vector<32x128xbf16>, vector<8x128xf32> -> vector<8x128xf32>
    %133 = arith.addf %130, %132 : vector<8x128xf32>
    %134 = arith.negf %133 : vector<8x128xf32>
    %135 = math.exp %134 : vector<8x128xf32>
    %cst_36 = arith.constant 1.000000e+00 : f32
    %136 = vector.broadcast %cst_36 : f32 to vector<8x128xf32>
    %137 = arith.addf %136, %135 : vector<8x128xf32>
    %138 = arith.divf %136, %137 : vector<8x128xf32>
    %139 = math.tanh %133 : vector<8x128xf32>
    %140 = vector.extract_strided_slice %138 {offsets = [0, 32], sizes = [8, 32], strides = [1, 1]} : vector<8x128xf32> to vector<8x32xf32>
    %141 = arith.mulf %140, %126 : vector<8x32xf32>
    %142 = vector.extract_strided_slice %138 {offsets = [0, 0], sizes = [8, 32], strides = [1, 1]} : vector<8x128xf32> to vector<8x32xf32>
    %143 = vector.extract_strided_slice %139 {offsets = [0, 64], sizes = [8, 32], strides = [1, 1]} : vector<8x128xf32> to vector<8x32xf32>
    %144 = arith.mulf %142, %143 : vector<8x32xf32>
    %145 = arith.addf %141, %144 : vector<8x32xf32>
    %146 = vector.extract_strided_slice %138 {offsets = [0, 96], sizes = [8, 32], strides = [1, 1]} : vector<8x128xf32> to vector<8x32xf32>
    %147 = math.tanh %145 : vector<8x32xf32>
    %148 = arith.mulf %146, %147 : vector<8x32xf32>
    %149 = vector.extract_strided_slice %49 {offsets = [40, 0], sizes = [8, 128], strides = [1, 1]} : vector<64x256xf32> to vector<8x128xf32>
    %150 = arith.truncf %148 : vector<8x32xf32> to vector<8x32xbf16>
    %cst_37 = arith.constant dense<0.000000e+00> : vector<8x128xf32>
    %151 = tpu.matmul %150, %51, %cst_37 {dimension_numbers = #tpu.dot_dimension_numbers<[1], [0], [0], [1], [0, 0, 1, 1], [], []>} : vector<8x32xbf16>, vector<32x128xbf16>, vector<8x128xf32> -> vector<8x128xf32>
    %152 = arith.addf %149, %151 : vector<8x128xf32>
    %153 = arith.negf %152 : vector<8x128xf32>
    %154 = math.exp %153 : vector<8x128xf32>
    %cst_38 = arith.constant 1.000000e+00 : f32
    %155 = vector.broadcast %cst_38 : f32 to vector<8x128xf32>
    %156 = arith.addf %155, %154 : vector<8x128xf32>
    %157 = arith.divf %155, %156 : vector<8x128xf32>
    %158 = math.tanh %152 : vector<8x128xf32>
    %159 = vector.extract_strided_slice %157 {offsets = [0, 32], sizes = [8, 32], strides = [1, 1]} : vector<8x128xf32> to vector<8x32xf32>
    %160 = arith.mulf %159, %145 : vector<8x32xf32>
    %161 = vector.extract_strided_slice %157 {offsets = [0, 0], sizes = [8, 32], strides = [1, 1]} : vector<8x128xf32> to vector<8x32xf32>
    %162 = vector.extract_strided_slice %158 {offsets = [0, 64], sizes = [8, 32], strides = [1, 1]} : vector<8x128xf32> to vector<8x32xf32>
    %163 = arith.mulf %161, %162 : vector<8x32xf32>
    %164 = arith.addf %160, %163 : vector<8x32xf32>
    %165 = vector.extract_strided_slice %157 {offsets = [0, 96], sizes = [8, 32], strides = [1, 1]} : vector<8x128xf32> to vector<8x32xf32>
    %166 = math.tanh %164 : vector<8x32xf32>
    %167 = arith.mulf %165, %166 : vector<8x32xf32>
    %168 = vector.extract_strided_slice %49 {offsets = [48, 0], sizes = [8, 128], strides = [1, 1]} : vector<64x256xf32> to vector<8x128xf32>
    %169 = arith.truncf %167 : vector<8x32xf32> to vector<8x32xbf16>
    %cst_39 = arith.constant dense<0.000000e+00> : vector<8x128xf32>
    %170 = tpu.matmul %169, %51, %cst_39 {dimension_numbers = #tpu.dot_dimension_numbers<[1], [0], [0], [1], [0, 0, 1, 1], [], []>} : vector<8x32xbf16>, vector<32x128xbf16>, vector<8x128xf32> -> vector<8x128xf32>
    %171 = arith.addf %168, %170 : vector<8x128xf32>
    %172 = arith.negf %171 : vector<8x128xf32>
    %173 = math.exp %172 : vector<8x128xf32>
    %cst_40 = arith.constant 1.000000e+00 : f32
    %174 = vector.broadcast %cst_40 : f32 to vector<8x128xf32>
    %175 = arith.addf %174, %173 : vector<8x128xf32>
    %176 = arith.divf %174, %175 : vector<8x128xf32>
    %177 = math.tanh %171 : vector<8x128xf32>
    %178 = vector.extract_strided_slice %176 {offsets = [0, 32], sizes = [8, 32], strides = [1, 1]} : vector<8x128xf32> to vector<8x32xf32>
    %179 = arith.mulf %178, %164 : vector<8x32xf32>
    %180 = vector.extract_strided_slice %176 {offsets = [0, 0], sizes = [8, 32], strides = [1, 1]} : vector<8x128xf32> to vector<8x32xf32>
    %181 = vector.extract_strided_slice %177 {offsets = [0, 64], sizes = [8, 32], strides = [1, 1]} : vector<8x128xf32> to vector<8x32xf32>
    %182 = arith.mulf %180, %181 : vector<8x32xf32>
    %183 = arith.addf %179, %182 : vector<8x32xf32>
    %184 = vector.extract_strided_slice %176 {offsets = [0, 96], sizes = [8, 32], strides = [1, 1]} : vector<8x128xf32> to vector<8x32xf32>
    %185 = math.tanh %183 : vector<8x32xf32>
    %186 = arith.mulf %184, %185 : vector<8x32xf32>
    %187 = vector.extract_strided_slice %49 {offsets = [56, 0], sizes = [8, 128], strides = [1, 1]} : vector<64x256xf32> to vector<8x128xf32>
    %188 = arith.truncf %186 : vector<8x32xf32> to vector<8x32xbf16>
    %cst_41 = arith.constant dense<0.000000e+00> : vector<8x128xf32>
    %189 = tpu.matmul %188, %51, %cst_41 {dimension_numbers = #tpu.dot_dimension_numbers<[1], [0], [0], [1], [0, 0, 1, 1], [], []>} : vector<8x32xbf16>, vector<32x128xbf16>, vector<8x128xf32> -> vector<8x128xf32>
    %190 = arith.addf %187, %189 : vector<8x128xf32>
    %191 = arith.negf %190 : vector<8x128xf32>
    %192 = math.exp %191 : vector<8x128xf32>
    %cst_42 = arith.constant 1.000000e+00 : f32
    %193 = vector.broadcast %cst_42 : f32 to vector<8x128xf32>
    %194 = arith.addf %193, %192 : vector<8x128xf32>
    %195 = arith.divf %193, %194 : vector<8x128xf32>
    %196 = math.tanh %190 : vector<8x128xf32>
    %197 = vector.extract_strided_slice %195 {offsets = [0, 32], sizes = [8, 32], strides = [1, 1]} : vector<8x128xf32> to vector<8x32xf32>
    %198 = arith.mulf %197, %183 : vector<8x32xf32>
    %199 = vector.extract_strided_slice %195 {offsets = [0, 0], sizes = [8, 32], strides = [1, 1]} : vector<8x128xf32> to vector<8x32xf32>
    %200 = vector.extract_strided_slice %196 {offsets = [0, 64], sizes = [8, 32], strides = [1, 1]} : vector<8x128xf32> to vector<8x32xf32>
    %201 = arith.mulf %199, %200 : vector<8x32xf32>
    %202 = arith.addf %198, %201 : vector<8x32xf32>
    %203 = vector.extract_strided_slice %195 {offsets = [0, 96], sizes = [8, 32], strides = [1, 1]} : vector<8x128xf32> to vector<8x32xf32>
    %204 = math.tanh %202 : vector<8x32xf32>
    %205 = arith.mulf %203, %204 : vector<8x32xf32>
    %206 = vector.extract_strided_slice %49 {offsets = [56, 128], sizes = [8, 128], strides = [1, 1]} : vector<64x256xf32> to vector<8x128xf32>
    %207 = arith.negf %206 : vector<8x128xf32>
    %208 = math.exp %207 : vector<8x128xf32>
    %cst_43 = arith.constant 1.000000e+00 : f32
    %209 = vector.broadcast %cst_43 : f32 to vector<8x128xf32>
    %210 = arith.addf %209, %208 : vector<8x128xf32>
    %211 = arith.divf %209, %210 : vector<8x128xf32>
    %212 = math.tanh %206 : vector<8x128xf32>
    %213 = vector.extract_strided_slice %211 {offsets = [0, 96], sizes = [8, 32], strides = [1, 1]} : vector<8x128xf32> to vector<8x32xf32>
    %214 = vector.extract_strided_slice %211 {offsets = [0, 0], sizes = [8, 32], strides = [1, 1]} : vector<8x128xf32> to vector<8x32xf32>
    %215 = vector.extract_strided_slice %212 {offsets = [0, 64], sizes = [8, 32], strides = [1, 1]} : vector<8x128xf32> to vector<8x32xf32>
    %216 = arith.mulf %214, %215 : vector<8x32xf32>
    %217 = math.tanh %216 : vector<8x32xf32>
    %218 = arith.mulf %213, %217 : vector<8x32xf32>
    %c784 = arith.constant 784 : index
    %c0_44 = arith.constant 0 : index
    %219 = vector.load %arg0[%c784, %c0_44] : memref<816x256xf32, #tpu.memory_space<vmem>>, vector<1x64xf32>
    %c792 = arith.constant 792 : index
    %c0_45 = arith.constant 0 : index
    %220 = vector.load %arg0[%c792, %c0_45] : memref<816x256xf32, #tpu.memory_space<vmem>>, vector<1x64xf32>
    %cst_46 = arith.constant dense<0.000000e+00> : vector<8xf32>
    %221 = vector.multi_reduction <add>, %205, %cst_46 [1] : vector<8x32xf32> to vector<8xf32>
    %222 = vector.shape_cast %221 : vector<8xf32> to vector<8x1xf32>
    %cst_47 = arith.constant dense<0.000000e+00> : vector<8xf32>
    %223 = vector.multi_reduction <add>, %218, %cst_47 [1] : vector<8x32xf32> to vector<8xf32>
    %224 = vector.shape_cast %223 : vector<8xf32> to vector<8x1xf32>
    %225 = arith.addf %222, %224 : vector<8x1xf32>
    %cst_48 = arith.constant 1.562500e-02 : f32
    %226 = vector.broadcast %cst_48 : f32 to vector<8x1xf32>
    %227 = arith.mulf %225, %226 : vector<8x1xf32>
    %228 = vector.broadcast %227 : vector<8x1xf32> to vector<8x32xf32>
    %229 = arith.subf %205, %228 : vector<8x32xf32>
    %230 = vector.broadcast %227 : vector<8x1xf32> to vector<8x32xf32>
    %231 = arith.subf %218, %230 : vector<8x32xf32>
    %232 = arith.mulf %229, %229 : vector<8x32xf32>
    %cst_49 = arith.constant dense<0.000000e+00> : vector<8xf32>
    %233 = vector.multi_reduction <add>, %232, %cst_49 [1] : vector<8x32xf32> to vector<8xf32>
    %234 = vector.shape_cast %233 : vector<8xf32> to vector<8x1xf32>
    %235 = arith.mulf %231, %231 : vector<8x32xf32>
    %cst_50 = arith.constant dense<0.000000e+00> : vector<8xf32>
    %236 = vector.multi_reduction <add>, %235, %cst_50 [1] : vector<8x32xf32> to vector<8xf32>
    %237 = vector.shape_cast %236 : vector<8xf32> to vector<8x1xf32>
    %238 = arith.addf %234, %237 : vector<8x1xf32>
    %cst_51 = arith.constant 1.562500e-02 : f32
    %239 = vector.broadcast %cst_51 : f32 to vector<8x1xf32>
    %240 = arith.mulf %238, %239 : vector<8x1xf32>
    %cst_52 = arith.constant 9.99999974E-6 : f32
    %241 = vector.broadcast %cst_52 : f32 to vector<8x1xf32>
    %242 = arith.addf %240, %241 : vector<8x1xf32>
    %243 = math.rsqrt %242 : vector<8x1xf32>
    %244 = vector.broadcast %243 : vector<8x1xf32> to vector<8x32xf32>
    %245 = arith.mulf %229, %244 : vector<8x32xf32>
    %246 = vector.extract_strided_slice %219 {offsets = [0, 0], sizes = [1, 32], strides = [1, 1]} : vector<1x64xf32> to vector<1x32xf32>
    %247 = vector.broadcast %246 : vector<1x32xf32> to vector<8x32xf32>
    %248 = arith.mulf %245, %247 : vector<8x32xf32>
    %249 = vector.extract_strided_slice %220 {offsets = [0, 0], sizes = [1, 32], strides = [1, 1]} : vector<1x64xf32> to vector<1x32xf32>
    %250 = vector.broadcast %249 : vector<1x32xf32> to vector<8x32xf32>
    %251 = arith.addf %248, %250 : vector<8x32xf32>
    %252 = vector.broadcast %243 : vector<8x1xf32> to vector<8x32xf32>
    %253 = arith.mulf %231, %252 : vector<8x32xf32>
    %254 = vector.extract_strided_slice %219 {offsets = [0, 32], sizes = [1, 32], strides = [1, 1]} : vector<1x64xf32> to vector<1x32xf32>
    %255 = vector.broadcast %254 : vector<1x32xf32> to vector<8x32xf32>
    %256 = arith.mulf %253, %255 : vector<8x32xf32>
    %257 = vector.extract_strided_slice %220 {offsets = [0, 32], sizes = [1, 32], strides = [1, 1]} : vector<1x64xf32> to vector<1x32xf32>
    %258 = vector.broadcast %257 : vector<1x32xf32> to vector<8x32xf32>
    %259 = arith.addf %256, %258 : vector<8x32xf32>
    %c408 = arith.constant 408 : index
    %c0_53 = arith.constant 0 : index
    %260 = vector.load %arg0[%c408, %c0_53] : memref<816x256xf32, #tpu.memory_space<vmem>>, vector<32x256xf32>
    %cst_54 = arith.constant dense<0.000000e+00> : vector<8x256xf32>
    %261 = tpu.matmul %35, %260, %cst_54 {dimension_numbers = #tpu.dot_dimension_numbers<[1], [0], [0], [1], [0, 0, 1, 1], [], []>} : vector<8x32xf32>, vector<32x256xf32>, vector<8x256xf32> -> vector<8x256xf32>
    %c440 = arith.constant 440 : index
    %c0_55 = arith.constant 0 : index
    %262 = vector.load %arg0[%c440, %c0_55] : memref<816x256xf32, #tpu.memory_space<vmem>>, vector<32x256xf32>
    %cst_56 = arith.constant dense<0.000000e+00> : vector<8x256xf32>
    %263 = tpu.matmul %251, %262, %cst_56 {dimension_numbers = #tpu.dot_dimension_numbers<[1], [0], [0], [1], [0, 0, 1, 1], [], []>} : vector<8x32xf32>, vector<32x256xf32>, vector<8x256xf32> -> vector<8x256xf32>
    %264 = arith.addf %261, %263 : vector<8x256xf32>
    %c472 = arith.constant 472 : index
    %c0_57 = arith.constant 0 : index
    %265 = vector.load %arg0[%c472, %c0_57] : memref<816x256xf32, #tpu.memory_space<vmem>>, vector<32x256xf32>
    %cst_58 = arith.constant dense<0.000000e+00> : vector<8x256xf32>
    %266 = tpu.matmul %259, %265, %cst_58 {dimension_numbers = #tpu.dot_dimension_numbers<[1], [0], [0], [1], [0, 0, 1, 1], [], []>} : vector<8x32xf32>, vector<32x256xf32>, vector<8x256xf32> -> vector<8x256xf32>
    %267 = arith.addf %264, %266 : vector<8x256xf32>
    %c800 = arith.constant 800 : index
    %c0_59 = arith.constant 0 : index
    %268 = vector.load %arg0[%c800, %c0_59] : memref<816x256xf32, #tpu.memory_space<vmem>>, vector<1x256xf32>
    %269 = vector.broadcast %268 : vector<1x256xf32> to vector<8x256xf32>
    %270 = arith.addf %267, %269 : vector<8x256xf32>
    %cst_60 = arith.constant 0.000000e+00 : f32
    %271 = vector.broadcast %cst_60 : f32 to vector<8x256xf32>
    %272 = arith.maximumf %270, %271 : vector<8x256xf32>
    %c504 = arith.constant 504 : index
    %c0_61 = arith.constant 0 : index
    %273 = vector.load %arg0[%c504, %c0_61] : memref<816x256xf32, #tpu.memory_space<vmem>>, vector<256x128xf32>
    %cst_62 = arith.constant dense<0.000000e+00> : vector<8x128xf32>
    %274 = tpu.matmul %272, %273, %cst_62 {dimension_numbers = #tpu.dot_dimension_numbers<[1], [0], [0], [1], [0, 0, 1, 1], [], []>} : vector<8x256xf32>, vector<256x128xf32>, vector<8x128xf32> -> vector<8x128xf32>
    %c808 = arith.constant 808 : index
    %c0_63 = arith.constant 0 : index
    %275 = vector.load %arg0[%c808, %c0_63] : memref<816x256xf32, #tpu.memory_space<vmem>>, vector<1x128xf32>
    %276 = vector.broadcast %275 : vector<1x128xf32> to vector<8x128xf32>
    %277 = arith.addf %274, %276 : vector<8x128xf32>
    %c0_64 = arith.constant 0 : index
    %c0_65 = arith.constant 0 : index
    %278 = vector.load %arg2[%c0_64, %c0_65] : memref<8x128xf32, #tpu.memory_space<vmem>>, vector<8x128xf32>
    tpu.vector_store %arg2[%c0_64, %c0_65], %277 {strides = array<i32>} : memref<8x128xf32, #tpu.memory_space<vmem>>, vector<8x128xf32>,
    return
  }
}

</mosaic_0001>

<llo_original>
// kernel: vqa_forward.1
$region0: #{vqa_forward.1}
  #allocation0 [shape = 'u32[]', space=smem, size = 0x4, offset = 0x4, fixed_abs, tag = 'smem constant byte address 0x4 - core index']
  #allocation1 [shape = 'u32[144,128]{1,0:T(1,128)}', space=vmem, size = 0x12000, scoped, tag = 'internal scratch']
  %s0 = inlined_call_operand.hbm [shape: f32[816,256], index: 0, kind: input, shape index: {}]
  %s1 = inlined_call_operand.vmem [shape: f32[104,128], index: 1, kind: input, shape index: {}]
  %s2 = inlined_call_operand.vmem [shape: f32[8,128], index: 2, kind: output, shape index: {}]
  %s3 = sld [smem:[#allocation0]]
  $region22: #{vqa_forward.1} parent=0
    _
  %s5 = ssub.s32 1, %s3
  %s6 = scalar_select 0, %s5, %s3
  $region1: #{vqa_forward.1} parent=0
    #allocation2 [shape = 'u8[835584]{0}', space=vmem, size = 0xcc000, scoped, tag = 'input window, operand 0, single buffered']
    #allocation3 [shape = 's32[1]{0}', space=sflag, size = 0x4, scoped, tag = 'scoped memory for vqa_forward.1']
    %7 = vsyncpa [#allocation3], 0
    // Predicated region
    $region2: #{vqa_forward.1} parent=1 // pred_check
      _
    $region3: #{vqa_forward.1} parent=1 // pred_check_branch
      %9 = sbr.rel (0) target = $region5
    $region4: #{vqa_forward.1} parent=1 // pred_region
      %s11 = ssub.s32 26112, 26112
      %12 = vsyncadd [#allocation3], %s11
      %s13 = sshll.u32 [#allocation2], 4
      %s14 = int_to_ptr.vmem [resolvable:$true] %s13
      %19 = dma.hbm_to_vmem [thread:$0]  %s0, 26112, %s14, [#allocation3], 256, 256, 16
    $region5: #{vqa_forward.1} parent=1 // pred_fallthru
      _
    // Predicated region
    $region6: #{vqa_forward.1} parent=1 // pred_check
      _
    $region7: #{vqa_forward.1} parent=1 // pred_check_branch
      %21 = sbr.rel (0) target = $region9
    $region8: #{vqa_forward.1} parent=1 // pred_region
      _
    $region9: #{vqa_forward.1} parent=1 // pred_fallthru
      _
    // Predicated region
    $region10: #{vqa_forward.1} parent=1 // pred_check
      _
    $region11: #{vqa_forward.1} parent=1 // pred_check_branch
      %23 = sbr.rel (0) target = $region13
    $region12: #{vqa_forward.1} parent=1 // pred_region
      %24 = dma.done [#allocation3], 26112
    $region13: #{vqa_forward.1} parent=1 // pred_fallthru
      _
    %v26 = vld [vmem:[%s1] sm:$0xff]
    %v27 = vld [vmem:[%s1 + $0x8] sm:$0xff]
    %v28 = vld [vmem:[%s1 + $0x10] sm:$0xff]
    %v29 = vld [vmem:[%s1 + $0x18] sm:$0xff]
    %v30 = vld [vmem:[#allocation2] sm:$0xff]
    %v31 = vld [vmem:[#allocation2 + $0x10] sm:$0xff]
    %v32 = vld [vmem:[#allocation2 + $0x20] sm:$0xff]
    %v33 = vld [vmem:[#allocation2 + $0x30] sm:$0xff]
    %v34 = vld [vmem:[#allocation2 + $0x40] sm:$0xff]
    %v35 = vld [vmem:[#allocation2 + $0x50] sm:$0xff]
    %v36 = vld [vmem:[%s1 + $0x1] sm:$0xff]
    %v37 = vld [vmem:[%s1 + $0x9] sm:$0xff]
    %v38 = vld [vmem:[%s1 + $0x11] sm:$0xff]
    %v39 = vld [vmem:[%s1 + $0x19] sm:$0xff]
    %v40 = vld [vmem:[#allocation2 + $0x60] sm:$0xff]
    %v41 = vld [vmem:[#allocation2 + $0x70] sm:$0xff]
    %v42 = vld [vmem:[#allocation2 + $0x80] sm:$0xff]
    %v43 = vld [vmem:[#allocation2 + $0x90] sm:$0xff]
    %v44 = vld [vmem:[#allocation2 + $0xa0] sm:$0xff]
    %v45 = vld [vmem:[#allocation2 + $0xb0] sm:$0xff]
    %vm46 = vcmask 392192
    %v48 = vsel %vm46, %v36, 0
    %v51 = vsel %vm46, %v37, 0
    %v54 = vsel %vm46, %v38, 0
    %v57 = vsel %vm46, %v39, 0
    %59 = vmatprep.subr.mxu0 0.0
    %60 = vmatpush1.msra.mxu0 0.0
    %61 = vmatprep.subr.mxu0 0.0
    %62 = vmatpush1.msra.mxu0 0.0
    %63 = vmatprep.subr.mxu0 0.0
    %64 = vmatpush1.msra.mxu0 0.0
    %65 = vmatprep.subr.mxu0 0.0
    %66 = vmatpush1.msra.mxu0 0.0
    %67 = vmatprep.subr.mxu0 0.0
    %68 = vmatpush1.msra.mxu0 0.0
    %69 = vmatprep.subr.mxu0 0.0
    %70 = vmatpush1.msra.mxu0 0.0
    %71 = vmatprep.subr.mxu0 0.0
    %72 = vmatpush1.msra.mxu0 0.0
    %73 = vmatprep.subr.mxu0 0.0
    %74 = vmatpush1.msra.mxu0 0.0
    %75 = vmatprep.subr.mxu0 0.0
    %76 = vmatpush1.msra.mxu0 0.0
    %77 = vmatprep.subr.mxu0 0.0
    %78 = vmatpush1.msra.mxu0 0.0
    %79 = vmatprep.subr.mxu0 0.0
    %80 = vmatpush1.msra.mxu0 %v45
    %81 = vmatprep.subr.mxu0 0.0
    %82 = vmatpush1.msra.mxu0 %v44
    %83 = vmatprep.subr.mxu0 0.0
    %84 = vmatpush1.msra.mxu0 %v43
    %85 = vmatprep.subr.mxu0 0.0
    %86 = vmatpush1.msra.mxu0 %v42
    %87 = vmatprep.subr.mxu0 0.0
    %88 = vmatpush1.msra.mxu0 %v41
    %89 = vmatprep.subr.mxu0 0.0
    %90 = vmatpush1.msra.mxu0 %v40
    %91 = vmatprep.subr.mxu0 0.0
    %92 = vmatpush2.msra.mxu0 0.0
    %93 = vmatprep.subr.mxu0 0.0
    %94 = vmatpush2.msra.mxu0 0.0
    %95 = vmatprep.subr.mxu0 0.0
    %96 = vmatpush2.msra.mxu0 0.0
    %97 = vmatprep.subr.mxu0 0.0
    %98 = vmatpush2.msra.mxu0 0.0
    %99 = vmatprep.subr.mxu0 0.0
    %100 = vmatpush2.msra.mxu0 0.0
    %101 = vmatprep.subr.mxu0 0.0
    %102 = vmatpush2.msra.mxu0 0.0
    %103 = vmatprep.subr.mxu0 0.0
    %104 = vmatpush2.msra.mxu0 0.0
    %105 = vmatprep.subr.mxu0 0.0
    %106 = vmatpush2.msra.mxu0 0.0
    %107 = vmatprep.subr.mxu0 0.0
    %108 = vmatpush2.msra.mxu0 0.0
    %109 = vmatprep.subr.mxu0 0.0
    %110 = vmatpush2.msra.mxu0 0.0
    %111 = vmatprep.subr.mxu0 0.0
    %112 = vmatpush2.msra.mxu0 0.0
    %113 = vmatprep.subr.mxu0 0.0
    %114 = vmatpush2.msra.mxu0 0.0
    %115 = vmatprep.subr.mxu0 0.0
    %116 = vmatpush2.msra.mxu0 0.0
    %117 = vmatprep.subr.mxu0 0.0
    %118 = vmatpush2.msra.mxu0 0.0
    %119 = vmatprep.subr.mxu0 0.0
    %120 = vmatpush2.msra.mxu0 0.0
    %121 = vmatprep.subr.mxu0 0.0
    %122 = vmatpush2.msra.mxu0 0.0
    %123 = vmatprep.mubr.f32.mxu0 0.0
    %124 = vmatmul.mubr.f32.gmra.mxu0 %v48
    %v125 = vpop.f32.mrf.mxu0
    %v126 = vadd.f32 0.0, %v125
    %v127 = vpop.f32.mrf.mxu0
    %128 = vmatprep.mubr.f32.mxu0 0.0
    %129 = vmatmul.mubr.f32.gmra.mxu0 %v51
    %v130 = vpop.f32.mrf.mxu0
    %v131 = vadd.f32 0.0, %v130
    %v132 = vpop.f32.mrf.mxu0
    %133 = vmatprep.mubr.f32.mxu0 0.0
    %134 = vmatmul.mubr.f32.gmra.mxu0 %v54
    %v135 = vpop.f32.mrf.mxu0
    %v136 = vadd.f32 0.0, %v135
    %v137 = vpop.f32.mrf.mxu0
    %138 = vmatprep.mubr.f32.mxu0 0.0
    %139 = vmatmul.mubr.f32.gmra.mxu0 %v57
    %v140 = vpop.f32.mrf.mxu0
    %v141 = vadd.f32 0.0, %v140
    %v142 = vpop.f32.mrf.mxu0
    %143 = vdwg.mxu0
    %v145 = vsel %vm46, %v26, 0
    %v148 = vsel %vm46, %v27, 0
    %v151 = vsel %vm46, %v28, 0
    %v154 = vsel %vm46, %v29, 0
    %156 = vmatprep.subr.mxu0 0.0
    %157 = vmatpush1.msra.mxu0 0.0
    %158 = vmatprep.subr.mxu0 0.0
    %159 = vmatpush1.msra.mxu0 0.0
    %160 = vmatprep.subr.mxu0 0.0
    %161 = vmatpush1.msra.mxu0 0.0
    %162 = vmatprep.subr.mxu0 0.0
    %163 = vmatpush1.msra.mxu0 0.0
    %164 = vmatprep.subr.mxu0 0.0
    %165 = vmatpush1.msra.mxu0 0.0
    %166 = vmatprep.subr.mxu0 0.0
    %167 = vmatpush1.msra.mxu0 0.0
    %168 = vmatprep.subr.mxu0 0.0
    %169 = vmatpush1.msra.mxu0 0.0
    %170 = vmatprep.subr.mxu0 0.0
    %171 = vmatpush1.msra.mxu0 0.0
    %172 = vmatprep.subr.mxu0 0.0
    %173 = vmatpush1.msra.mxu0 0.0
    %174 = vmatprep.subr.mxu0 0.0
    %175 = vmatpush1.msra.mxu0 0.0
    %176 = vmatprep.subr.mxu0 0.0
    %177 = vmatpush1.msra.mxu0 %v35
    %178 = vmatprep.subr.mxu0 0.0
    %179 = vmatpush1.msra.mxu0 %v34
    %180 = vmatprep.subr.mxu0 0.0
    %181 = vmatpush1.msra.mxu0 %v33
    %182 = vmatprep.subr.mxu0 0.0
    %183 = vmatpush1.msra.mxu0 %v32
    %184 = vmatprep.subr.mxu0 0.0
    %185 = vmatpush1.msra.mxu0 %v31
    %186 = vmatprep.subr.mxu0 0.0
    %187 = vmatpush1.msra.mxu0 %v30
    %188 = vmatprep.subr.mxu0 0.0
    %189 = vmatpush2.msra.mxu0 0.0
    %190 = vmatprep.subr.mxu0 0.0
    %191 = vmatpush2.msra.mxu0 0.0
    %192 = vmatprep.subr.mxu0 0.0
    %193 = vmatpush2.msra.mxu0 0.0
    %194 = vmatprep.subr.mxu0 0.0
    %195 = vmatpush2.msra.mxu0 0.0
    %196 = vmatprep.subr.mxu0 0.0
    %197 = vmatpush2.msra.mxu0 0.0
    %198 = vmatprep.subr.mxu0 0.0
    %199 = vmatpush2.msra.mxu0 0.0
    %200 = vmatprep.subr.mxu0 0.0
    %201 = vmatpush2.msra.mxu0 0.0
    %202 = vmatprep.subr.mxu0 0.0
    %203 = vmatpush2.msra.mxu0 0.0
    %204 = vmatprep.subr.mxu0 0.0
    %205 = vmatpush2.msra.mxu0 0.0
    %206 = vmatprep.subr.mxu0 0.0
    %207 = vmatpush2.msra.mxu0 0.0
    %208 = vmatprep.subr.mxu0 0.0
    %209 = vmatpush2.msra.mxu0 0.0
    %210 = vmatprep.subr.mxu0 0.0
    %211 = vmatpush2.msra.mxu0 0.0
    %212 = vmatprep.subr.mxu0 0.0
    %213 = vmatpush2.msra.mxu0 0.0
    %214 = vmatprep.subr.mxu0 0.0
    %215 = vmatpush2.msra.mxu0 0.0
    %216 = vmatprep.subr.mxu0 0.0
    %217 = vmatpush2.msra.mxu0 0.0
    %218 = vmatprep.subr.mxu0 0.0
    %219 = vmatpush2.msra.mxu0 0.0
    %220 = vmatprep.mubr.f32.mxu0 0.0
    %221 = vmatmul.mubr.f32.gmra.mxu0 %v145
    %v222 = vpop.f32.mrf.mxu0
    %v223 = vadd.f32 %v126, %v222
    %v224 = vpop.f32.mrf.mxu0
    %225 = vmatprep.mubr.f32.mxu0 0.0
    %226 = vmatmul.mubr.f32.gmra.mxu0 %v148
    %v227 = vpop.f32.mrf.mxu0
    %v228 = vadd.f32 %v131, %v227
    %v229 = vpop.f32.mrf.mxu0
    %230 = vmatprep.mubr.f32.mxu0 0.0
    %231 = vmatmul.mubr.f32.gmra.mxu0 %v151
    %v232 = vpop.f32.mrf.mxu0
    %v233 = vadd.f32 %v136, %v232
    %v234 = vpop.f32.mrf.mxu0
    %235 = vmatprep.mubr.f32.mxu0 0.0
    %236 = vmatmul.mubr.f32.gmra.mxu0 %v154
    %v237 = vpop.f32.mrf.mxu0
    %v238 = vadd.f32 %v141, %v237
    %v239 = vpop.f32.mrf.mxu0
    %240 = vdwg.mxu0
    %v241 = vld [vmem:[%s1 + $0x2] sm:$0xff]
    %v242 = vld [vmem:[%s1 + $0xa] sm:$0xff]
    %v243 = vld [vmem:[%s1 + $0x12] sm:$0xff]
    %v244 = vld [vmem:[%s1 + $0x1a] sm:$0xff]
    %v245 = vld [vmem:[#allocation2 + $0xc0] sm:$0xff]
    %v246 = vld [vmem:[#allocation2 + $0xd0] sm:$0xff]
    %v247 = vld [vmem:[#allocation2 + $0xe0] sm:$0xff]
    %v248 = vld [vmem:[#allocation2 + $0xf0] sm:$0xff]
    %v249 = vld [vmem:[#allocation2 + $0x100] sm:$0xff]
    %v250 = vld [vmem:[#allocation2 + $0x110] sm:$0xff]
    %v252 = vsel %vm46, %v241, 0
    %v255 = vsel %vm46, %v242, 0
    %v258 = vsel %vm46, %v243, 0
    %v261 = vsel %vm46, %v244, 0
    %263 = vmatprep.subr.mxu0 0.0
    %264 = vmatpush1.msra.mxu0 0.0
    %265 = vmatprep.subr.mxu0 0.0
    %266 = vmatpush1.msra.mxu0 0.0
    %267 = vmatprep.subr.mxu0 0.0
    %268 = vmatpush1.msra.mxu0 0.0
    %269 = vmatprep.subr.mxu0 0.0
    %270 = vmatpush1.msra.mxu0 0.0
    %271 = vmatprep.subr.mxu0 0.0
    %272 = vmatpush1.msra.mxu0 0.0
    %273 = vmatprep.subr.mxu0 0.0
    %274 = vmatpush1.msra.mxu0 0.0
    %275 = vmatprep.subr.mxu0 0.0
    %276 = vmatpush1.msra.mxu0 0.0
    %277 = vmatprep.subr.mxu0 0.0
    %278 = vmatpush1.msra.mxu0 0.0
    %279 = vmatprep.subr.mxu0 0.0
    %280 = vmatpush1.msra.mxu0 0.0
    %281 = vmatprep.subr.mxu0 0.0
    %282 = vmatpush1.msra.mxu0 0.0
    %283 = vmatprep.subr.mxu0 0.0
    %284 = vmatpush1.msra.mxu0 %v250
    %285 = vmatprep.subr.mxu0 0.0
    %286 = vmatpush1.msra.mxu0 %v249
    %287 = vmatprep.subr.mxu0 0.0
    %288 = vmatpush1.msra.mxu0 %v248
    %289 = vmatprep.subr.mxu0 0.0
    %290 = vmatpush1.msra.mxu0 %v247
    %291 = vmatprep.subr.mxu0 0.0
    %292 = vmatpush1.msra.mxu0 %v246
    %293 = vmatprep.subr.mxu0 0.0
    %294 = vmatpush1.msra.mxu0 %v245
    %295 = vmatprep.subr.mxu0 0.0
    %296 = vmatpush2.msra.mxu0 0.0
    %297 = vmatprep.subr.mxu0 0.0
    %298 = vmatpush2.msra.mxu0 0.0
    %299 = vmatprep.subr.mxu0 0.0
    %300 = vmatpush2.msra.mxu0 0.0
    %301 = vmatprep.subr.mxu0 0.0
    %302 = vmatpush2.msra.mxu0 0.0
    %303 = vmatprep.subr.mxu0 0.0
    %304 = vmatpush2.msra.mxu0 0.0
    %305 = vmatprep.subr.mxu0 0.0
    %306 = vmatpush2.msra.mxu0 0.0
    %307 = vmatprep.subr.mxu0 0.0
    %308 = vmatpush2.msra.mxu0 0.0
    %309 = vmatprep.subr.mxu0 0.0
    %310 = vmatpush2.msra.mxu0 0.0
    %311 = vmatprep.subr.mxu0 0.0
    %312 = vmatpush2.msra.mxu0 0.0
    %313 = vmatprep.subr.mxu0 0.0
    %314 = vmatpush2.msra.mxu0 0.0
    %315 = vmatprep.subr.mxu0 0.0
    %316 = vmatpush2.msra.mxu0 0.0
    %317 = vmatprep.subr.mxu0 0.0
    %318 = vmatpush2.msra.mxu0 0.0
    %319 = vmatprep.subr.mxu0 0.0
    %320 = vmatpush2.msra.mxu0 0.0
    %321 = vmatprep.subr.mxu0 0.0
    %322 = vmatpush2.msra.mxu0 0.0
    %323 = vmatprep.subr.mxu0 0.0
    %324 = vmatpush2.msra.mxu0 0.0
    %325 = vmatprep.subr.mxu0 0.0
    %326 = vmatpush2.msra.mxu0 0.0
    %327 = vmatprep.mubr.f32.mxu0 0.0
    %328 = vmatmul.mubr.f32.gmra.mxu0 %v252
    %v329 = vpop.f32.mrf.mxu0
    %v330 = vadd.f32 0.0, %v329
    %v331 = vpop.f32.mrf.mxu0
    %332 = vmatprep.mubr.f32.mxu0 0.0
    %333 = vmatmul.mubr.f32.gmra.mxu0 %v255
    %v334 = vpop.f32.mrf.mxu0
    %v335 = vadd.f32 0.0, %v334
    %v336 = vpop.f32.mrf.mxu0
    %337 = vmatprep.mubr.f32.mxu0 0.0
    %338 = vmatmul.mubr.f32.gmra.mxu0 %v258
    %v339 = vpop.f32.mrf.mxu0
    %v340 = vadd.f32 0.0, %v339
    %v341 = vpop.f32.mrf.mxu0
    %342 = vmatprep.mubr.f32.mxu0 0.0
    %343 = vmatmul.mubr.f32.gmra.mxu0 %v261
    %v344 = vpop.f32.mrf.mxu0
    %v345 = vadd.f32 0.0, %v344
    %v346 = vpop.f32.mrf.mxu0
    %347 = vdwg.mxu0
    %v348 = vadd.f32 %v223, %v330
    %v349 = vadd.f32 %v228, %v335
    %v350 = vadd.f32 %v233, %v340
    %v351 = vadd.f32 %v238, %v345
    %v352 = vld [vmem:[#allocation2 + $0x5f0] ss:$0 sm:$0xff]
    %v353 = vadd.f32 %v348, %v352
    %v354 = vadd.f32 %v349, %v352
    %v355 = vadd.f32 %v350, %v352
    %v356 = vadd.f32 %v351, %v352
    %v357 = vmax.f32 %v353, 0.0
    %v358 = vmax.f32 %v354, 0.0
    %v359 = vmax.f32 %v355, 0.0
    %v360 = vmax.f32 %v356, 0.0
    %v361 = vlaneseq
    %v362 = vshrl.u32 %v361, 7
    %v363 = vadd.s32 %v362, 8
    %v364 = vadd.s32 %v362, 16
    %v365 = vadd.s32 %v362, 24
    %v366 = vand.u32 %v362, 15
    %v367 = vand.u32 %v363, 15
    %v368 = vand.u32 %v364, 15
    %v369 = vand.u32 %v365, 15
    %vm370 = vcmp.lt.s32.totalorder %v366, 14
    %vm371 = vcmp.lt.s32.totalorder %v367, 14
    %vm372 = vcmp.lt.s32.totalorder %v368, 14
    %vm373 = vcmp.lt.s32.totalorder %v369, 14
    %v374 = vsel %vm370, %v357, 0.0
    %v375 = vsel %vm371, %v358, 0.0
    %v376 = vsel %vm372, %v359, 0.0
    %v377 = vsel %vm373, %v360, 0.0
    %vm378 = vcmask 916480
    %v379 = vsel %vm378, %v374, 0.0
    %v380 = vsel %vm378, %v375, 0.0
    %v381 = vadd.f32 %v379, %v380
    %v382 = vrot.slane %v381, 4
    %v383 = vadd.f32 %v381, %v382
    %v384 = vrot.slane %v383, 2
    %v385 = vadd.f32 %v383, %v384
    %v386 = vrot.slane %v385, 1
    %v387 = vadd.f32 %v385, %v386
    %v388 = vsel %vm378, %v376, 0.0
    %v389 = vsel %vm378, %v377, 0.0
    %v390 = vadd.f32 %v388, %v389
    %v391 = vrot.slane %v390, 4
    %v392 = vadd.f32 %v390, %v391
    %v393 = vrot.slane %v392, 2
    %v394 = vadd.f32 %v392, %v393
    %v395 = vrot.slane %v394, 1
    %v396 = vadd.f32 %v394, %v395
    %vm397 = vcmask 1040384
    %v398 = vsel %vm397, %v387, %v396
    %vm399 = vcmask 1041408
    %v400 = vsel %vm399, %v398, 0.0
    %v401 = vld [vmem:[#allocation2 + $0x120] sm:$0xff]
    %v402 = vld [vmem:[#allocation2 + $0x130] sm:$0xff]
    %v403 = vld [vmem:[#allocation2 + $0x140] sm:$0xff]
    %v404 = vld [vmem:[#allocation2 + $0x150] sm:$0xff]
    %v405 = vld [vmem:[#allocation2 + $0x160] sm:$0xff]
    %v406 = vld [vmem:[#allocation2 + $0x170] sm:$0xff]
    %v407 = vld [vmem:[#allocation2 + $0x180] sm:$0xff]
    %v408 = vld [vmem:[#allocation2 + $0x190] sm:$0xff]
    %v409 = vld [vmem:[#allocation2 + $0x1a0] sm:$0xff]
    %v410 = vld [vmem:[#allocation2 + $0x1b0] sm:$0xff]
    %v411 = vld [vmem:[#allocation2 + $0x1c0] sm:$0xff]
    %v412 = vld [vmem:[#allocation2 + $0x1d0] sm:$0xff]
    %v413 = vld [vmem:[#allocation2 + $0x1e0] sm:$0xff]
    %v414 = vld [vmem:[#allocation2 + $0x1f0] sm:$0xff]
    %v415 = vld [vmem:[#allocation2 + $0x600] ss:$0 sm:$0xff]
    %v417 = vsel %vm378, %v400, 0
    %419 = vmatprep.subr.mxu0 0.0
    %420 = vmatpush1.msra.mxu0 0.0
    %421 = vmatprep.subr.mxu0 0.0
    %422 = vmatpush1.msra.mxu0 0.0
    %423 = vmatprep.subr.mxu0 0.0
    %424 = vmatpush1.msra.mxu0 %v414
    %425 = vmatprep.subr.mxu0 0.0
    %426 = vmatpush1.msra.mxu0 %v413
    %427 = vmatprep.subr.mxu0 0.0
    %428 = vmatpush1.msra.mxu0 %v412
    %429 = vmatprep.subr.mxu0 0.0
    %430 = vmatpush1.msra.mxu0 %v411
    %431 = vmatprep.subr.mxu0 0.0
    %432 = vmatpush1.msra.mxu0 %v410
    %433 = vmatprep.subr.mxu0 0.0
    %434 = vmatpush1.msra.mxu0 %v409
    %435 = vmatprep.subr.mxu0 0.0
    %436 = vmatpush1.msra.mxu0 %v408
    %437 = vmatprep.subr.mxu0 0.0
    %438 = vmatpush1.msra.mxu0 %v407
    %439 = vmatprep.subr.mxu0 0.0
    %440 = vmatpush1.msra.mxu0 %v406
    %441 = vmatprep.subr.mxu0 0.0
    %442 = vmatpush1.msra.mxu0 %v405
    %443 = vmatprep.subr.mxu0 0.0
    %444 = vmatpush1.msra.mxu0 %v404
    %445 = vmatprep.subr.mxu0 0.0
    %446 = vmatpush1.msra.mxu0 %v403
    %447 = vmatprep.subr.mxu0 0.0
    %448 = vmatpush1.msra.mxu0 %v402
    %449 = vmatprep.subr.mxu0 0.0
    %450 = vmatpush1.msra.mxu0 %v401
    %451 = vmatprep.subr.mxu0 0.0
    %452 = vmatpush2.msra.mxu0 0.0
    %453 = vmatprep.subr.mxu0 0.0
    %454 = vmatpush2.msra.mxu0 0.0
    %455 = vmatprep.subr.mxu0 0.0
    %456 = vmatpush2.msra.mxu0 0.0
    %457 = vmatprep.subr.mxu0 0.0
    %458 = vmatpush2.msra.mxu0 0.0
    %459 = vmatprep.subr.mxu0 0.0
    %460 = vmatpush2.msra.mxu0 0.0
    %461 = vmatprep.subr.mxu0 0.0
    %462 = vmatpush2.msra.mxu0 0.0
    %463 = vmatprep.subr.mxu0 0.0
    %464 = vmatpush2.msra.mxu0 0.0
    %465 = vmatprep.subr.mxu0 0.0
    %466 = vmatpush2.msra.mxu0 0.0
    %467 = vmatprep.subr.mxu0 0.0
    %468 = vmatpush2.msra.mxu0 0.0
    %469 = vmatprep.subr.mxu0 0.0
    %470 = vmatpush2.msra.mxu0 0.0
    %471 = vmatprep.subr.mxu0 0.0
    %472 = vmatpush2.msra.mxu0 0.0
    %473 = vmatprep.subr.mxu0 0.0
    %474 = vmatpush2.msra.mxu0 0.0
    %475 = vmatprep.subr.mxu0 0.0
    %476 = vmatpush2.msra.mxu0 0.0
    %477 = vmatprep.subr.mxu0 0.0
    %478 = vmatpush2.msra.mxu0 0.0
    %479 = vmatprep.subr.mxu0 0.0
    %480 = vmatpush2.msra.mxu0 0.0
    %481 = vmatprep.subr.mxu0 0.0
    %482 = vmatpush2.msra.mxu0 0.0
    %483 = vmatprep.mubr.f32.mxu0 0.0
    %484 = vmatmul.mubr.f32.gmra.mxu0 %v417
    %v485 = vpop.f32.mrf.mxu0
    %v486 = vadd.f32 %v415, %v485
    %v487 = vpop.f32.mrf.mxu0
    %488 = vdwg.mxu0
    %v489 = vld [vmem:[%s1 + $0x28] sm:$0xff]
    %v490 = vld [vmem:[%s1 + $0x30] sm:$0xff]
    %v491 = vld [vmem:[%s1 + $0x38] sm:$0xff]
    %v492 = vld [vmem:[%s1 + $0x40] sm:$0xff]
    %v493 = vld [vmem:[%s1 + $0x48] sm:$0xff]
    %v494 = vld [vmem:[%s1 + $0x50] sm:$0xff]
    %v495 = vld [vmem:[%s1 + $0x58] sm:$0xff]
    %v496 = vld [vmem:[%s1 + $0x60] sm:$0xff]
    %v497 = vlaneseq
    %v498 = vand.u32 %v497, 127
    %v499 = vcvt.s32.f32 %v498
    %501 = vset.pattern.permute.xlu0 0
    %502 = vperm.xlu0 %501, %v489
    %v503 = vpop.permute.xlu0 %502
    %506 = vset.pattern.permute.xlu0 0
    %507 = vperm.xlu0 %506, %v490
    %v508 = vpop.permute.xlu0 %507
    %511 = vset.pattern.permute.xlu0 0
    %512 = vperm.xlu0 %511, %v491
    %v513 = vpop.permute.xlu0 %512
    %516 = vset.pattern.permute.xlu0 0
    %517 = vperm.xlu0 %516, %v492
    %v518 = vpop.permute.xlu0 %517
    %521 = vset.pattern.permute.xlu0 0
    %522 = vperm.xlu0 %521, %v493
    %v523 = vpop.permute.xlu0 %522
    %526 = vset.pattern.permute.xlu0 0
    %527 = vperm.xlu0 %526, %v494
    %v528 = vpop.permute.xlu0 %527
    %531 = vset.pattern.permute.xlu0 0
    %532 = vperm.xlu0 %531, %v495
    %v533 = vpop.permute.xlu0 %532
    %536 = vset.pattern.permute.xlu0 0
    %537 = vperm.xlu0 %536, %v496
    %v538 = vpop.permute.xlu0 %537
    %vm540 = vcmp.eq.f32.partialorder %v503, %v499
    %vm541 = vcmp.eq.f32.partialorder %v508, %v499
    %vm542 = vcmp.eq.f32.partialorder %v513, %v499
    %vm543 = vcmp.eq.f32.partialorder %v518, %v499
    %vm544 = vcmp.eq.f32.partialorder %v523, %v499
    %vm545 = vcmp.eq.f32.partialorder %v528, %v499
    %vm546 = vcmp.eq.f32.partialorder %v533, %v499
    %vm547 = vcmp.eq.f32.partialorder %v538, %v499
    %v548 = vsel %vm540, 1, 0
    %v549 = vsel %vm541, 1, 0
    %v550 = vsel %vm542, 1, 0
    %v551 = vsel %vm543, 1, 0
    %v552 = vsel %vm544, 1, 0
    %v553 = vsel %vm545, 1, 0
    %v554 = vsel %vm546, 1, 0
    %v555 = vsel %vm547, 1, 0
    %v556 = vcvt.s32.f32 %v548
    %v557 = vcvt.s32.f32 %v549
    %v558 = vcvt.s32.f32 %v550
    %v559 = vcvt.s32.f32 %v551
    %v560 = vcvt.s32.f32 %v552
    %v561 = vcvt.s32.f32 %v553
    %v562 = vcvt.s32.f32 %v554
    %v563 = vcvt.s32.f32 %v555
    %v564 = vld [vmem:[#allocation2 + $0x200] sm:$0xff]
    %v565 = vld [vmem:[#allocation2 + $0x210] sm:$0xff]
    %v566 = vld [vmem:[#allocation2 + $0x220] sm:$0xff]
    %v567 = vld [vmem:[#allocation2 + $0x230] sm:$0xff]
    %v568 = vld [vmem:[#allocation2 + $0x240] sm:$0xff]
    %v569 = vld [vmem:[#allocation2 + $0x250] sm:$0xff]
    %v570 = vld [vmem:[#allocation2 + $0x260] sm:$0x3]
    %vm571 = vcmask 408576
    %v573 = vsel %vm571, %v556, 0
    %v576 = vsel %vm571, %v557, 0
    %v579 = vsel %vm571, %v558, 0
    %v582 = vsel %vm571, %v559, 0
    %v585 = vsel %vm571, %v560, 0
    %v588 = vsel %vm571, %v561, 0
    %v591 = vsel %vm571, %v562, 0
    %v594 = vsel %vm571, %v563, 0
    %v597 = vsel %vm399, %v570, 0
    %599 = vmatprep.subr.mxu0 0.0
    %600 = vmatpush1.msra.mxu0 0.0
    %601 = vmatprep.subr.mxu0 0.0
    %602 = vmatpush1.msra.mxu0 0.0
    %603 = vmatprep.subr.mxu0 0.0
    %604 = vmatpush1.msra.mxu0 0.0
    %605 = vmatprep.subr.mxu0 0.0
    %606 = vmatpush1.msra.mxu0 0.0
    %607 = vmatprep.subr.mxu0 0.0
    %608 = vmatpush1.msra.mxu0 0.0
    %609 = vmatprep.subr.mxu0 0.0
    %610 = vmatpush1.msra.mxu0 0.0
    %611 = vmatprep.subr.mxu0 0.0
    %612 = vmatpush1.msra.mxu0 0.0
    %613 = vmatprep.subr.mxu0 0.0
    %614 = vmatpush1.msra.mxu0 0.0
    %615 = vmatprep.subr.mxu0 0.0
    %616 = vmatpush1.msra.mxu0 0.0
    %617 = vmatprep.subr.mxu0 0.0
    %618 = vmatpush1.msra.mxu0 %v597
    %619 = vmatprep.subr.mxu0 0.0
    %620 = vmatpush1.msra.mxu0 %v569
    %621 = vmatprep.subr.mxu0 0.0
    %622 = vmatpush1.msra.mxu0 %v568
    %623 = vmatprep.subr.mxu0 0.0
    %624 = vmatpush1.msra.mxu0 %v567
    %625 = vmatprep.subr.mxu0 0.0
    %626 = vmatpush1.msra.mxu0 %v566
    %627 = vmatprep.subr.mxu0 0.0
    %628 = vmatpush1.msra.mxu0 %v565
    %629 = vmatprep.subr.mxu0 0.0
    %630 = vmatpush1.msra.mxu0 %v564
    %631 = vmatprep.subr.mxu0 0.0
    %632 = vmatpush2.msra.mxu0 0.0
    %633 = vmatprep.subr.mxu0 0.0
    %634 = vmatpush2.msra.mxu0 0.0
    %635 = vmatprep.subr.mxu0 0.0
    %636 = vmatpush2.msra.mxu0 0.0
    %637 = vmatprep.subr.mxu0 0.0
    %638 = vmatpush2.msra.mxu0 0.0
    %639 = vmatprep.subr.mxu0 0.0
    %640 = vmatpush2.msra.mxu0 0.0
    %641 = vmatprep.subr.mxu0 0.0
    %642 = vmatpush2.msra.mxu0 0.0
    %643 = vmatprep.subr.mxu0 0.0
    %644 = vmatpush2.msra.mxu0 0.0
    %645 = vmatprep.subr.mxu0 0.0
    %646 = vmatpush2.msra.mxu0 0.0
    %647 = vmatprep.subr.mxu0 0.0
    %648 = vmatpush2.msra.mxu0 0.0
    %649 = vmatprep.subr.mxu0 0.0
    %650 = vmatpush2.msra.mxu0 0.0
    %651 = vmatprep.subr.mxu0 0.0
    %652 = vmatpush2.msra.mxu0 0.0
    %653 = vmatprep.subr.mxu0 0.0
    %654 = vmatpush2.msra.mxu0 0.0
    %655 = vmatprep.subr.mxu0 0.0
    %656 = vmatpush2.msra.mxu0 0.0
    %657 = vmatprep.subr.mxu0 0.0
    %658 = vmatpush2.msra.mxu0 0.0
    %659 = vmatprep.subr.mxu0 0.0
    %660 = vmatpush2.msra.mxu0 0.0
    %661 = vmatprep.subr.mxu0 0.0
    %662 = vmatpush2.msra.mxu0 0.0
    %663 = vmatprep.mubr.f32.mxu0 0.0
    %664 = vmatmul.mubr.f32.gmra.mxu0 %v573
    %v665 = vpop.f32.mrf.mxu0
    %v666 = vadd.f32 0.0, %v665
    %v667 = vpop.f32.mrf.mxu0
    %668 = vmatprep.mubr.f32.mxu0 0.0
    %669 = vmatmul.mubr.f32.gmra.mxu0 %v576
    %v670 = vpop.f32.mrf.mxu0
    %v671 = vadd.f32 0.0, %v670
    %v672 = vpop.f32.mrf.mxu0
    %673 = vmatprep.mubr.f32.mxu0 0.0
    %674 = vmatmul.mubr.f32.gmra.mxu0 %v579
    %v675 = vpop.f32.mrf.mxu0
    %v676 = vadd.f32 0.0, %v675
    %v677 = vpop.f32.mrf.mxu0
    %678 = vmatprep.mubr.f32.mxu0 0.0
    %679 = vmatmul.mubr.f32.gmra.mxu0 %v582
    %v680 = vpop.f32.mrf.mxu0
    %v681 = vadd.f32 0.0, %v680
    %v682 = vpop.f32.mrf.mxu0
    %683 = vmatprep.mubr.f32.mxu0 0.0
    %684 = vmatmul.mubr.f32.gmra.mxu0 %v585
    %v685 = vpop.f32.mrf.mxu0
    %v686 = vadd.f32 0.0, %v685
    %v687 = vpop.f32.mrf.mxu0
    %688 = vmatprep.mubr.f32.mxu0 0.0
    %689 = vmatmul.mubr.f32.gmra.mxu0 %v588
    %v690 = vpop.f32.mrf.mxu0
    %v691 = vadd.f32 0.0, %v690
    %v692 = vpop.f32.mrf.mxu0
    %693 = vmatprep.mubr.f32.mxu0 0.0
    %694 = vmatmul.mubr.f32.gmra.mxu0 %v591
    %v695 = vpop.f32.mrf.mxu0
    %v696 = vadd.f32 0.0, %v695
    %v697 = vpop.f32.mrf.mxu0
    %698 = vmatprep.mubr.f32.mxu0 0.0
    %699 = vmatmul.mubr.f32.gmra.mxu0 %v594
    %v700 = vpop.f32.mrf.mxu0
    %v701 = vadd.f32 0.0, %v700
    %v702 = vpop.f32.mrf.mxu0
    %703 = vdwg.mxu0
    %v704 = vld [vmem:[#allocation2 + $0x270] sm:$0xff]
    %v705 = vld [vmem:[#allocation2 + $0x278] sm:$0xff]
    %v706 = vld [vmem:[#allocation2 + $0x280] sm:$0xff]
    %v707 = vld [vmem:[#allocation2 + $0x288] sm:$0xff]
    %v708 = vld [vmem:[#allocation2 + $0x290] sm:$0xff]
    %v709 = vld [vmem:[#allocation2 + $0x298] sm:$0xff]
    %v710 = vld [vmem:[#allocation2 + $0x2a0] sm:$0xff]
    %v711 = vld [vmem:[#allocation2 + $0x2a8] sm:$0xff]
    %v712 = vld [vmem:[#allocation2 + $0x2b0] sm:$0xff]
    %v713 = vld [vmem:[#allocation2 + $0x2b8] sm:$0xff]
    %v714 = vld [vmem:[#allocation2 + $0x2c0] sm:$0xff]
    %v715 = vld [vmem:[#allocation2 + $0x2c8] sm:$0xff]
    %v716 = vld [vmem:[#allocation2 + $0x2d0] sm:$0xff]
    %v717 = vld [vmem:[#allocation2 + $0x2d8] sm:$0xff]
    %v718 = vld [vmem:[#allocation2 + $0x2e0] sm:$0xff]
    %v719 = vld [vmem:[#allocation2 + $0x2e8] sm:$0xff]
    %s720 = scalar_lea.vmem [#allocation2], 1552
    %v721 = vld [vmem:[%s720] ss:$8 sm:$0x3]
    %v723 = vlaneseq
    %v724 = vshrl.u32 %v723, 7
    %v725 = vsub.s32 0, %v724
    %v726 = vrot.slane %v721, %v725
    %v727 = vlaneseq
    %v728 = vshrl.u32 %v727, 7
    %v729 = vsub.s32 1, %v728
    %v730 = vrot.slane %v721, %v729
    %vm733 = vcmask 523264
    %v735 = vsel %vm733, %v666, 0
    %v738 = vsel %vm733, %v671, 0
    %v741 = vsel %vm733, %v676, 0
    %v744 = vsel %vm733, %v681, 0
    %v747 = vsel %vm733, %v686, 0
    %v750 = vsel %vm733, %v691, 0
    %v753 = vsel %vm733, %v696, 0
    %v756 = vsel %vm733, %v701, 0
    %758 = vmatprep.subr.mxu0 0.0
    %759 = vmatpush1.msra.mxu0 0.0
    %760 = vmatprep.subr.mxu0 0.0
    %761 = vmatpush1.msra.mxu0 0.0
    %762 = vmatprep.subr.mxu0 0.0
    %763 = vmatpush1.msra.mxu0 0.0
    %764 = vmatprep.subr.mxu0 0.0
    %765 = vmatpush1.msra.mxu0 0.0
    %766 = vmatprep.subr.mxu0 0.0
    %767 = vmatpush1.msra.mxu0 0.0
    %768 = vmatprep.subr.mxu0 0.0
    %769 = vmatpush1.msra.mxu0 0.0
    %770 = vmatprep.subr.mxu0 0.0
    %771 = vmatpush1.msra.mxu0 0.0
    %772 = vmatprep.subr.mxu0 0.0
    %773 = vmatpush1.msra.mxu0 0.0
    %774 = vmatprep.subr.mxu0 %v719
    %775 = vmatpush1.msra.mxu0 %v718
    %776 = vmatprep.subr.mxu0 %v717
    %777 = vmatpush1.msra.mxu0 %v716
    %778 = vmatprep.subr.mxu0 %v715
    %779 = vmatpush1.msra.mxu0 %v714
    %780 = vmatprep.subr.mxu0 %v713
    %781 = vmatpush1.msra.mxu0 %v712
    %782 = vmatprep.subr.mxu0 %v711
    %783 = vmatpush1.msra.mxu0 %v710
    %784 = vmatprep.subr.mxu0 %v709
    %785 = vmatpush1.msra.mxu0 %v708
    %786 = vmatprep.subr.mxu0 %v707
    %787 = vmatpush1.msra.mxu0 %v706
    %788 = vmatprep.subr.mxu0 %v705
    %789 = vmatpush1.msra.mxu0 %v704
    %790 = vmatprep.subr.mxu0 0.0
    %791 = vmatpush2.msra.mxu0 0.0
    %792 = vmatprep.subr.mxu0 0.0
    %793 = vmatpush2.msra.mxu0 0.0
    %794 = vmatprep.subr.mxu0 0.0
    %795 = vmatpush2.msra.mxu0 0.0
    %796 = vmatprep.subr.mxu0 0.0
    %797 = vmatpush2.msra.mxu0 0.0
    %798 = vmatprep.subr.mxu0 0.0
    %799 = vmatpush2.msra.mxu0 0.0
    %800 = vmatprep.subr.mxu0 0.0
    %801 = vmatpush2.msra.mxu0 0.0
    %802 = vmatprep.subr.mxu0 0.0
    %803 = vmatpush2.msra.mxu0 0.0
    %804 = vmatprep.subr.mxu0 0.0
    %805 = vmatpush2.msra.mxu0 0.0
    %806 = vmatprep.subr.mxu0 0.0
    %807 = vmatpush2.msra.mxu0 0.0
    %808 = vmatprep.subr.mxu0 0.0
    %809 = vmatpush2.msra.mxu0 0.0
    %810 = vmatprep.subr.mxu0 0.0
    %811 = vmatpush2.msra.mxu0 0.0
    %812 = vmatprep.subr.mxu0 0.0
    %813 = vmatpush2.msra.mxu0 0.0
    %814 = vmatprep.subr.mxu0 0.0
    %815 = vmatpush2.msra.mxu0 0.0
    %816 = vmatprep.subr.mxu0 0.0
    %817 = vmatpush2.msra.mxu0 0.0
    %818 = vmatprep.subr.mxu0 0.0
    %819 = vmatpush2.msra.mxu0 0.0
    %820 = vmatprep.subr.mxu0 0.0
    %821 = vmatpush2.msra.mxu0 0.0
    %822 = vmatprep.mubr.f32.mxu0 0.0
    %823 = vmatmul.mubr.f32.gmra.mxu0 %v735
    %v824 = vpop.f32.mrf.mxu0
    %v825 = vadd.f32 %v726, %v824
    %v826 = vpop.f32.mrf.mxu0
    %827 = vmatprep.mubr.f32.mxu0 0.0
    %828 = vmatmul.mubr.f32.gmra.mxu0 %v738
    %v829 = vpop.f32.mrf.mxu0
    %v830 = vadd.f32 %v726, %v829
    %v831 = vpop.f32.mrf.mxu0
    %832 = vmatprep.mubr.f32.mxu0 0.0
    %833 = vmatmul.mubr.f32.gmra.mxu0 %v741
    %v834 = vpop.f32.mrf.mxu0
    %v835 = vadd.f32 %v726, %v834
    %v836 = vpop.f32.mrf.mxu0
    %837 = vmatprep.mubr.f32.mxu0 0.0
    %838 = vmatmul.mubr.f32.gmra.mxu0 %v744
    %v839 = vpop.f32.mrf.mxu0
    %v840 = vadd.f32 %v726, %v839
    %v841 = vpop.f32.mrf.mxu0
    %842 = vmatprep.mubr.f32.mxu0 0.0
    %843 = vmatmul.mubr.f32.gmra.mxu0 %v747
    %v844 = vpop.f32.mrf.mxu0
    %v845 = vadd.f32 %v726, %v844
    %v846 = vpop.f32.mrf.mxu0
    %847 = vmatprep.mubr.f32.mxu0 0.0
    %848 = vmatmul.mubr.f32.gmra.mxu0 %v750
    %v849 = vpop.f32.mrf.mxu0
    %v850 = vadd.f32 %v726, %v849
    %v851 = vpop.f32.mrf.mxu0
    %852 = vmatprep.mubr.f32.mxu0 0.0
    %853 = vmatmul.mubr.f32.gmra.mxu0 %v753
    %v854 = vpop.f32.mrf.mxu0
    %v855 = vadd.f32 %v726, %v854
    %v856 = vpop.f32.mrf.mxu0
    %857 = vmatprep.mubr.f32.mxu0 0.0
    %858 = vmatmul.mubr.f32.gmra.mxu0 %v756
    %v859 = vpop.f32.mrf.mxu0
    %v860 = vadd.f32 %v726, %v859
    %v861 = vpop.f32.mrf.mxu0
    %v862 = vadd.f32 %v730, %v861
    %863 = vdwg.mxu0
    %v864 = vld [vmem:[#allocation2 + $0x2f0] sm:$0xff]
    %v865 = vld [vmem:[#allocation2 + $0x300] sm:$0xff]
    %v866 = vld [vmem:[#allocation2 + $0x310] sm:$0xff]
    %v867 = vld [vmem:[#allocation2 + $0x320] sm:$0xff]
    %v868 = vpack.c.bf16 %v865, %v864
    %v869 = vpack.c.bf16 %v867, %v866
    %vm870 = vcmask 261120
    %v872 = vsel %vm870, 0, 0
    %874 = vmatprep.subr.bf16.mxu0 0
    %875 = vmatpush1.bf16.msra.mxu0 0
    %876 = vmatprep.subr.bf16.mxu0 0
    %877 = vmatpush1.bf16.msra.mxu0 0
    %878 = vmatprep.subr.bf16.mxu0 0
    %879 = vmatpush1.bf16.msra.mxu0 0
    %880 = vmatprep.subr.bf16.mxu0 0
    %881 = vmatpush1.bf16.msra.mxu0 0
    %882 = vmatprep.subr.bf16.mxu0 0
    %883 = vmatpush1.bf16.msra.mxu0 0
    %884 = vmatprep.subr.bf16.mxu0 0
    %885 = vmatpush1.bf16.msra.mxu0 0
    %886 = vmatprep.subr.bf16.mxu0 0
    %887 = vmatpush1.bf16.msra.mxu0 %v869
    %888 = vmatprep.subr.bf16.mxu0 0
    %889 = vmatpush1.bf16.msra.mxu0 %v868
    %890 = vmatprep.subr.bf16.mxu0 0
    %891 = vmatpush2.bf16.msra.mxu0 0
    %892 = vmatprep.subr.bf16.mxu0 0
    %893 = vmatpush2.bf16.msra.mxu0 0
    %894 = vmatprep.subr.bf16.mxu0 0
    %895 = vmatpush2.bf16.msra.mxu0 0
    %896 = vmatprep.subr.bf16.mxu0 0
    %897 = vmatpush2.bf16.msra.mxu0 0
    %898 = vmatprep.subr.bf16.mxu0 0
    %899 = vmatpush2.bf16.msra.mxu0 0
    %900 = vmatprep.subr.bf16.mxu0 0
    %901 = vmatpush2.bf16.msra.mxu0 0
    %902 = vmatprep.subr.bf16.mxu0 0
    %903 = vmatpush2.bf16.msra.mxu0 0
    %904 = vmatprep.subr.bf16.mxu0 0
    %905 = vmatpush2.bf16.msra.mxu0 0
    %906 = vmatprep.mubr.bf16.mxu0 0
    %907 = vmatmul.mubr.bf16.gmra.mxu0 %v872
    %v908 = vpop.f32.mrf.mxu0
    %v909 = vadd.f32 0.0, %v908
    %v910 = vpop.f32.mrf.mxu0
    %v911 = vpop.f32.mrf.mxu0
    %v912 = vpop.f32.mrf.mxu0
    %913 = vdwg.mxu0
    %v914 = vadd.f32 %v825, %v909
    %v915 = vxor.u32 %v914, 2147483648
    %v916 = vmul.f32 %v915, 1.442695
    %v917 = vpow.pop %v916
    %v918 = vadd.f32 %v917, 1.0
    %v919 = vrcp.pop %v918
    %v920 = vmul.f32 1.0, %v919
    %v921 = vtanh.pop %v914
    %v922 = vmul.f32 %v920, 0.0
    %924 = vrot.lane.b32.xlu0 %v921, 64
    %v925 = vpop.permute.xlu0 %924
    %v927 = vmul.f32 %v920, %v925
    %929 = vrot.lane.b32.xlu0 %v927, 32
    %v930 = vpop.permute.xlu0 %929
    %v932 = vadd.f32 %v922, %v930
    %v933 = vtanh.pop %v932
    %935 = vrot.lane.b32.xlu0 %v933, 64
    %v936 = vpop.permute.xlu0 %935
    %v938 = vmul.f32 %v920, %v936
    %v939 = vpack.c.bf16 %v938, %v938
    %941 = vrot.lane.b32.xlu0 %v939, 32
    %v942 = vpop.permute.xlu0 %941
    %v944 = vsel %vm870, %v942, 0
    %946 = vmatprep.subr.bf16.mxu0 0
    %947 = vmatpush1.bf16.msra.mxu0 0
    %948 = vmatprep.subr.bf16.mxu0 0
    %949 = vmatpush1.bf16.msra.mxu0 0
    %950 = vmatprep.subr.bf16.mxu0 0
    %951 = vmatpush1.bf16.msra.mxu0 0
    %952 = vmatprep.subr.bf16.mxu0 0
    %953 = vmatpush1.bf16.msra.mxu0 0
    %954 = vmatprep.subr.bf16.mxu0 0
    %955 = vmatpush1.bf16.msra.mxu0 0
    %956 = vmatprep.subr.bf16.mxu0 0
    %957 = vmatpush1.bf16.msra.mxu0 0
    %958 = vmatprep.subr.bf16.mxu0 0
    %959 = vmatpush1.bf16.msra.mxu0 %v869
    %960 = vmatprep.subr.bf16.mxu0 0
    %961 = vmatpush1.bf16.msra.mxu0 %v868
    %962 = vmatprep.subr.bf16.mxu0 0
    %963 = vmatpush2.bf16.msra.mxu0 0
    %964 = vmatprep.subr.bf16.mxu0 0
    %965 = vmatpush2.bf16.msra.mxu0 0
    %966 = vmatprep.subr.bf16.mxu0 0
    %967 = vmatpush2.bf16.msra.mxu0 0
    %968 = vmatprep.subr.bf16.mxu0 0
    %969 = vmatpush2.bf16.msra.mxu0 0
    %970 = vmatprep.subr.bf16.mxu0 0
    %971 = vmatpush2.bf16.msra.mxu0 0
    %972 = vmatprep.subr.bf16.mxu0 0
    %973 = vmatpush2.bf16.msra.mxu0 0
    %974 = vmatprep.subr.bf16.mxu0 0
    %975 = vmatpush2.bf16.msra.mxu0 0
    %976 = vmatprep.subr.bf16.mxu0 0
    %977 = vmatpush2.bf16.msra.mxu0 0
    %978 = vmatprep.mubr.bf16.mxu0 0
    %979 = vmatmul.mubr.bf16.gmra.mxu0 %v944
    %v980 = vpop.f32.mrf.mxu0
    %v981 = vadd.f32 0.0, %v980
    %v982 = vpop.f32.mrf.mxu0
    %v983 = vpop.f32.mrf.mxu0
    %v984 = vpop.f32.mrf.mxu0
    %985 = vdwg.mxu0
    %v986 = vadd.f32 %v830, %v981
    %v987 = vxor.u32 %v986, 2147483648
    %v988 = vmul.f32 %v987, 1.442695
    %v989 = vpow.pop %v988
    %v990 = vadd.f32 %v989, 1.0
    %v991 = vrcp.pop %v990
    %v992 = vmul.f32 1.0, %v991
    %v993 = vtanh.pop %v986
    %v994 = vmul.f32 %v992, %v932
    %996 = vrot.lane.b32.xlu0 %v993, 64
    %v997 = vpop.permute.xlu0 %996
    %v999 = vmul.f32 %v992, %v997
    %1001 = vrot.lane.b32.xlu0 %v999, 32
    %v1002 = vpop.permute.xlu0 %1001
    %v1004 = vadd.f32 %v994, %v1002
    %v1005 = vtanh.pop %v1004
    %1007 = vrot.lane.b32.xlu0 %v1005, 64
    %v1008 = vpop.permute.xlu0 %1007
    %v1010 = vmul.f32 %v992, %v1008
    %v1011 = vpack.c.bf16 %v1010, %v1010
    %1013 = vrot.lane.b32.xlu0 %v1011, 32
    %v1014 = vpop.permute.xlu0 %1013
    %v1016 = vsel %vm870, %v1014, 0
    %1018 = vmatprep.subr.bf16.mxu0 0
    %1019 = vmatpush1.bf16.msra.mxu0 0
    %1020 = vmatprep.subr.bf16.mxu0 0
    %1021 = vmatpush1.bf16.msra.mxu0 0
    %1022 = vmatprep.subr.bf16.mxu0 0
    %1023 = vmatpush1.bf16.msra.mxu0 0
    %1024 = vmatprep.subr.bf16.mxu0 0
    %1025 = vmatpush1.bf16.msra.mxu0 0
    %1026 = vmatprep.subr.bf16.mxu0 0
    %1027 = vmatpush1.bf16.msra.mxu0 0
    %1028 = vmatprep.subr.bf16.mxu0 0
    %1029 = vmatpush1.bf16.msra.mxu0 0
    %1030 = vmatprep.subr.bf16.mxu0 0
    %1031 = vmatpush1.bf16.msra.mxu0 %v869
    %1032 = vmatprep.subr.bf16.mxu0 0
    %1033 = vmatpush1.bf16.msra.mxu0 %v868
    %1034 = vmatprep.subr.bf16.mxu0 0
    %1035 = vmatpush2.bf16.msra.mxu0 0
    %1036 = vmatprep.subr.bf16.mxu0 0
    %1037 = vmatpush2.bf16.msra.mxu0 0
    %1038 = vmatprep.subr.bf16.mxu0 0
    %1039 = vmatpush2.bf16.msra.mxu0 0
    %1040 = vmatprep.subr.bf16.mxu0 0
    %1041 = vmatpush2.bf16.msra.mxu0 0
    %1042 = vmatprep.subr.bf16.mxu0 0
    %1043 = vmatpush2.bf16.msra.mxu0 0
    %1044 = vmatprep.subr.bf16.mxu0 0
    %1045 = vmatpush2.bf16.msra.mxu0 0
    %1046 = vmatprep.subr.bf16.mxu0 0
    %1047 = vmatpush2.bf16.msra.mxu0 0
    %1048 = vmatprep.subr.bf16.mxu0 0
    %1049 = vmatpush2.bf16.msra.mxu0 0
    %1050 = vmatprep.mubr.bf16.mxu0 0
    %1051 = vmatmul.mubr.bf16.gmra.mxu0 %v1016
    %v1052 = vpop.f32.mrf.mxu0
    %v1053 = vadd.f32 0.0, %v1052
    %v1054 = vpop.f32.mrf.mxu0
    %v1055 = vpop.f32.mrf.mxu0
    %v1056 = vpop.f32.mrf.mxu0
    %1057 = vdwg.mxu0
    %v1058 = vadd.f32 %v835, %v1053
    %v1059 = vxor.u32 %v1058, 2147483648
    %v1060 = vmul.f32 %v1059, 1.442695
    %v1061 = vpow.pop %v1060
    %v1062 = vadd.f32 %v1061, 1.0
    %v1063 = vrcp.pop %v1062
    %v1064 = vmul.f32 1.0, %v1063
    %v1065 = vtanh.pop %v1058
    %v1066 = vmul.f32 %v1064, %v1004
    %1068 = vrot.lane.b32.xlu0 %v1065, 64
    %v1069 = vpop.permute.xlu0 %1068
    %v1071 = vmul.f32 %v1064, %v1069
    %1073 = vrot.lane.b32.xlu0 %v1071, 32
    %v1074 = vpop.permute.xlu0 %1073
    %v1076 = vadd.f32 %v1066, %v1074
    %v1077 = vtanh.pop %v1076
    %1079 = vrot.lane.b32.xlu0 %v1077, 64
    %v1080 = vpop.permute.xlu0 %1079
    %v1082 = vmul.f32 %v1064, %v1080
    %v1083 = vpack.c.bf16 %v1082, %v1082
    %1085 = vrot.lane.b32.xlu0 %v1083, 32
    %v1086 = vpop.permute.xlu0 %1085
    %v1088 = vsel %vm870, %v1086, 0
    %1090 = vmatprep.subr.bf16.mxu0 0
    %1091 = vmatpush1.bf16.msra.mxu0 0
    %1092 = vmatprep.subr.bf16.mxu0 0
    %1093 = vmatpush1.bf16.msra.mxu0 0
    %1094 = vmatprep.subr.bf16.mxu0 0
    %1095 = vmatpush1.bf16.msra.mxu0 0
    %1096 = vmatprep.subr.bf16.mxu0 0
    %1097 = vmatpush1.bf16.msra.mxu0 0
    %1098 = vmatprep.subr.bf16.mxu0 0
    %1099 = vmatpush1.bf16.msra.mxu0 0
    %1100 = vmatprep.subr.bf16.mxu0 0
    %1101 = vmatpush1.bf16.msra.mxu0 0
    %1102 = vmatprep.subr.bf16.mxu0 0
    %1103 = vmatpush1.bf16.msra.mxu0 %v869
    %1104 = vmatprep.subr.bf16.mxu0 0
    %1105 = vmatpush1.bf16.msra.mxu0 %v868
    %1106 = vmatprep.subr.bf16.mxu0 0
    %1107 = vmatpush2.bf16.msra.mxu0 0
    %1108 = vmatprep.subr.bf16.mxu0 0
    %1109 = vmatpush2.bf16.msra.mxu0 0
    %1110 = vmatprep.subr.bf16.mxu0 0
    %1111 = vmatpush2.bf16.msra.mxu0 0
    %1112 = vmatprep.subr.bf16.mxu0 0
    %1113 = vmatpush2.bf16.msra.mxu0 0
    %1114 = vmatprep.subr.bf16.mxu0 0
    %1115 = vmatpush2.bf16.msra.mxu0 0
    %1116 = vmatprep.subr.bf16.mxu0 0
    %1117 = vmatpush2.bf16.msra.mxu0 0
    %1118 = vmatprep.subr.bf16.mxu0 0
    %1119 = vmatpush2.bf16.msra.mxu0 0
    %1120 = vmatprep.subr.bf16.mxu0 0
    %1121 = vmatpush2.bf16.msra.mxu0 0
    %1122 = vmatprep.mubr.bf16.mxu0 0
    %1123 = vmatmul.mubr.bf16.gmra.mxu0 %v1088
    %v1124 = vpop.f32.mrf.mxu0
    %v1125 = vadd.f32 0.0, %v1124
    %v1126 = vpop.f32.mrf.mxu0
    %v1127 = vpop.f32.mrf.mxu0
    %v1128 = vpop.f32.mrf.mxu0
    %1129 = vdwg.mxu0
    %v1130 = vadd.f32 %v840, %v1125
    %v1131 = vxor.u32 %v1130, 2147483648
    %v1132 = vmul.f32 %v1131, 1.442695
    %v1133 = vpow.pop %v1132
    %v1134 = vadd.f32 %v1133, 1.0
    %v1135 = vrcp.pop %v1134
    %v1136 = vmul.f32 1.0, %v1135
    %v1137 = vtanh.pop %v1130
    %v1138 = vmul.f32 %v1136, %v1076
    %1140 = vrot.lane.b32.xlu0 %v1137, 64
    %v1141 = vpop.permute.xlu0 %1140
    %v1143 = vmul.f32 %v1136, %v1141
    %1145 = vrot.lane.b32.xlu0 %v1143, 32
    %v1146 = vpop.permute.xlu0 %1145
    %v1148 = vadd.f32 %v1138, %v1146
    %v1149 = vtanh.pop %v1148
    %1151 = vrot.lane.b32.xlu0 %v1149, 64
    %v1152 = vpop.permute.xlu0 %1151
    %v1154 = vmul.f32 %v1136, %v1152
    %v1155 = vpack.c.bf16 %v1154, %v1154
    %1157 = vrot.lane.b32.xlu0 %v1155, 32
    %v1158 = vpop.permute.xlu0 %1157
    %v1160 = vsel %vm870, %v1158, 0
    %1162 = vmatprep.subr.bf16.mxu0 0
    %1163 = vmatpush1.bf16.msra.mxu0 0
    %1164 = vmatprep.subr.bf16.mxu0 0
    %1165 = vmatpush1.bf16.msra.mxu0 0
    %1166 = vmatprep.subr.bf16.mxu0 0
    %1167 = vmatpush1.bf16.msra.mxu0 0
    %1168 = vmatprep.subr.bf16.mxu0 0
    %1169 = vmatpush1.bf16.msra.mxu0 0
    %1170 = vmatprep.subr.bf16.mxu0 0
    %1171 = vmatpush1.bf16.msra.mxu0 0
    %1172 = vmatprep.subr.bf16.mxu0 0
    %1173 = vmatpush1.bf16.msra.mxu0 0
    %1174 = vmatprep.subr.bf16.mxu0 0
    %1175 = vmatpush1.bf16.msra.mxu0 %v869
    %1176 = vmatprep.subr.bf16.mxu0 0
    %1177 = vmatpush1.bf16.msra.mxu0 %v868
    %1178 = vmatprep.subr.bf16.mxu0 0
    %1179 = vmatpush2.bf16.msra.mxu0 0
    %1180 = vmatprep.subr.bf16.mxu0 0
    %1181 = vmatpush2.bf16.msra.mxu0 0
    %1182 = vmatprep.subr.bf16.mxu0 0
    %1183 = vmatpush2.bf16.msra.mxu0 0
    %1184 = vmatprep.subr.bf16.mxu0 0
    %1185 = vmatpush2.bf16.msra.mxu0 0
    %1186 = vmatprep.subr.bf16.mxu0 0
    %1187 = vmatpush2.bf16.msra.mxu0 0
    %1188 = vmatprep.subr.bf16.mxu0 0
    %1189 = vmatpush2.bf16.msra.mxu0 0
    %1190 = vmatprep.subr.bf16.mxu0 0
    %1191 = vmatpush2.bf16.msra.mxu0 0
    %1192 = vmatprep.subr.bf16.mxu0 0
    %1193 = vmatpush2.bf16.msra.mxu0 0
    %1194 = vmatprep.mubr.bf16.mxu0 0
    %1195 = vmatmul.mubr.bf16.gmra.mxu0 %v1160
    %v1196 = vpop.f32.mrf.mxu0
    %v1197 = vadd.f32 0.0, %v1196
    %v1198 = vpop.f32.mrf.mxu0
    %v1199 = vpop.f32.mrf.mxu0
    %v1200 = vpop.f32.mrf.mxu0
    %1201 = vdwg.mxu0
    %v1202 = vadd.f32 %v845, %v1197
    %v1203 = vxor.u32 %v1202, 2147483648
    %v1204 = vmul.f32 %v1203, 1.442695
    %v1205 = vpow.pop %v1204
    %v1206 = vadd.f32 %v1205, 1.0
    %v1207 = vrcp.pop %v1206
    %v1208 = vmul.f32 1.0, %v1207
    %v1209 = vtanh.pop %v1202
    %v1210 = vmul.f32 %v1208, %v1148
    %1212 = vrot.lane.b32.xlu0 %v1209, 64
    %v1213 = vpop.permute.xlu0 %1212
    %v1215 = vmul.f32 %v1208, %v1213
    %1217 = vrot.lane.b32.xlu0 %v1215, 32
    %v1218 = vpop.permute.xlu0 %1217
    %v1220 = vadd.f32 %v1210, %v1218
    %v1221 = vtanh.pop %v1220
    %1223 = vrot.lane.b32.xlu0 %v1221, 64
    %v1224 = vpop.permute.xlu0 %1223
    %v1226 = vmul.f32 %v1208, %v1224
    %v1227 = vpack.c.bf16 %v1226, %v1226
    %1229 = vrot.lane.b32.xlu0 %v1227, 32
    %v1230 = vpop.permute.xlu0 %1229
    %v1232 = vsel %vm870, %v1230, 0
    %1234 = vmatprep.subr.bf16.mxu0 0
    %1235 = vmatpush1.bf16.msra.mxu0 0
    %1236 = vmatprep.subr.bf16.mxu0 0
    %1237 = vmatpush1.bf16.msra.mxu0 0
    %1238 = vmatprep.subr.bf16.mxu0 0
    %1239 = vmatpush1.bf16.msra.mxu0 0
    %1240 = vmatprep.subr.bf16.mxu0 0
    %1241 = vmatpush1.bf16.msra.mxu0 0
    %1242 = vmatprep.subr.bf16.mxu0 0
    %1243 = vmatpush1.bf16.msra.mxu0 0
    %1244 = vmatprep.subr.bf16.mxu0 0
    %1245 = vmatpush1.bf16.msra.mxu0 0
    %1246 = vmatprep.subr.bf16.mxu0 0
    %1247 = vmatpush1.bf16.msra.mxu0 %v869
    %1248 = vmatprep.subr.bf16.mxu0 0
    %1249 = vmatpush1.bf16.msra.mxu0 %v868
    %1250 = vmatprep.subr.bf16.mxu0 0
    %1251 = vmatpush2.bf16.msra.mxu0 0
    %1252 = vmatprep.subr.bf16.mxu0 0
    %1253 = vmatpush2.bf16.msra.mxu0 0
    %1254 = vmatprep.subr.bf16.mxu0 0
    %1255 = vmatpush2.bf16.msra.mxu0 0
    %1256 = vmatprep.subr.bf16.mxu0 0
    %1257 = vmatpush2.bf16.msra.mxu0 0
    %1258 = vmatprep.subr.bf16.mxu0 0
    %1259 = vmatpush2.bf16.msra.mxu0 0
    %1260 = vmatprep.subr.bf16.mxu0 0
    %1261 = vmatpush2.bf16.msra.mxu0 0
    %1262 = vmatprep.subr.bf16.mxu0 0
    %1263 = vmatpush2.bf16.msra.mxu0 0
    %1264 = vmatprep.subr.bf16.mxu0 0
    %1265 = vmatpush2.bf16.msra.mxu0 0
    %1266 = vmatprep.mubr.bf16.mxu0 0
    %1267 = vmatmul.mubr.bf16.gmra.mxu0 %v1232
    %v1268 = vpop.f32.mrf.mxu0
    %v1269 = vadd.f32 0.0, %v1268
    %v1270 = vpop.f32.mrf.mxu0
    %v1271 = vpop.f32.mrf.mxu0
    %v1272 = vpop.f32.mrf.mxu0
    %1273 = vdwg.mxu0
    %v1274 = vadd.f32 %v850, %v1269
    %v1275 = vxor.u32 %v1274, 2147483648
    %v1276 = vmul.f32 %v1275, 1.442695
    %v1277 = vpow.pop %v1276
    %v1278 = vadd.f32 %v1277, 1.0
    %v1279 = vrcp.pop %v1278
    %v1280 = vmul.f32 1.0, %v1279
    %v1281 = vtanh.pop %v1274
    %v1282 = vmul.f32 %v1280, %v1220
    %1284 = vrot.lane.b32.xlu0 %v1281, 64
    %v1285 = vpop.permute.xlu0 %1284
    %v1287 = vmul.f32 %v1280, %v1285
    %1289 = vrot.lane.b32.xlu0 %v1287, 32
    %v1290 = vpop.permute.xlu0 %1289
    %v1292 = vadd.f32 %v1282, %v1290
    %v1293 = vtanh.pop %v1292
    %1295 = vrot.lane.b32.xlu0 %v1293, 64
    %v1296 = vpop.permute.xlu0 %1295
    %v1298 = vmul.f32 %v1280, %v1296
    %v1299 = vpack.c.bf16 %v1298, %v1298
    %1301 = vrot.lane.b32.xlu0 %v1299, 32
    %v1302 = vpop.permute.xlu0 %1301
    %v1304 = vsel %vm870, %v1302, 0
    %1306 = vmatprep.subr.bf16.mxu0 0
    %1307 = vmatpush1.bf16.msra.mxu0 0
    %1308 = vmatprep.subr.bf16.mxu0 0
    %1309 = vmatpush1.bf16.msra.mxu0 0
    %1310 = vmatprep.subr.bf16.mxu0 0
    %1311 = vmatpush1.bf16.msra.mxu0 0
    %1312 = vmatprep.subr.bf16.mxu0 0
    %1313 = vmatpush1.bf16.msra.mxu0 0
    %1314 = vmatprep.subr.bf16.mxu0 0
    %1315 = vmatpush1.bf16.msra.mxu0 0
    %1316 = vmatprep.subr.bf16.mxu0 0
    %1317 = vmatpush1.bf16.msra.mxu0 0
    %1318 = vmatprep.subr.bf16.mxu0 0
    %1319 = vmatpush1.bf16.msra.mxu0 %v869
    %1320 = vmatprep.subr.bf16.mxu0 0
    %1321 = vmatpush1.bf16.msra.mxu0 %v868
    %1322 = vmatprep.subr.bf16.mxu0 0
    %1323 = vmatpush2.bf16.msra.mxu0 0
    %1324 = vmatprep.subr.bf16.mxu0 0
    %1325 = vmatpush2.bf16.msra.mxu0 0
    %1326 = vmatprep.subr.bf16.mxu0 0
    %1327 = vmatpush2.bf16.msra.mxu0 0
    %1328 = vmatprep.subr.bf16.mxu0 0
    %1329 = vmatpush2.bf16.msra.mxu0 0
    %1330 = vmatprep.subr.bf16.mxu0 0
    %1331 = vmatpush2.bf16.msra.mxu0 0
    %1332 = vmatprep.subr.bf16.mxu0 0
    %1333 = vmatpush2.bf16.msra.mxu0 0
    %1334 = vmatprep.subr.bf16.mxu0 0
    %1335 = vmatpush2.bf16.msra.mxu0 0
    %1336 = vmatprep.subr.bf16.mxu0 0
    %1337 = vmatpush2.bf16.msra.mxu0 0
    %1338 = vmatprep.mubr.bf16.mxu0 0
    %1339 = vmatmul.mubr.bf16.gmra.mxu0 %v1304
    %v1340 = vpop.f32.mrf.mxu0
    %v1341 = vadd.f32 0.0, %v1340
    %v1342 = vpop.f32.mrf.mxu0
    %v1343 = vpop.f32.mrf.mxu0
    %v1344 = vpop.f32.mrf.mxu0
    %1345 = vdwg.mxu0
    %v1346 = vadd.f32 %v855, %v1341
    %v1347 = vxor.u32 %v1346, 2147483648
    %v1348 = vmul.f32 %v1347, 1.442695
    %v1349 = vpow.pop %v1348
    %v1350 = vadd.f32 %v1349, 1.0
    %v1351 = vrcp.pop %v1350
    %v1352 = vmul.f32 1.0, %v1351
    %v1353 = vtanh.pop %v1346
    %v1354 = vmul.f32 %v1352, %v1292
    %1356 = vrot.lane.b32.xlu0 %v1353, 64
    %v1357 = vpop.permute.xlu0 %1356
    %v1359 = vmul.f32 %v1352, %v1357
    %1361 = vrot.lane.b32.xlu0 %v1359, 32
    %v1362 = vpop.permute.xlu0 %1361
    %v1364 = vadd.f32 %v1354, %v1362
    %v1365 = vtanh.pop %v1364
    %1367 = vrot.lane.b32.xlu0 %v1365, 64
    %v1368 = vpop.permute.xlu0 %1367
    %v1370 = vmul.f32 %v1352, %v1368
    %v1371 = vpack.c.bf16 %v1370, %v1370
    %1373 = vrot.lane.b32.xlu0 %v1371, 32
    %v1374 = vpop.permute.xlu0 %1373
    %v1376 = vsel %vm870, %v1374, 0
    %1378 = vmatprep.subr.bf16.mxu0 0
    %1379 = vmatpush1.bf16.msra.mxu0 0
    %1380 = vmatprep.subr.bf16.mxu0 0
    %1381 = vmatpush1.bf16.msra.mxu0 0
    %1382 = vmatprep.subr.bf16.mxu0 0
    %1383 = vmatpush1.bf16.msra.mxu0 0
    %1384 = vmatprep.subr.bf16.mxu0 0
    %1385 = vmatpush1.bf16.msra.mxu0 0
    %1386 = vmatprep.subr.bf16.mxu0 0
    %1387 = vmatpush1.bf16.msra.mxu0 0
    %1388 = vmatprep.subr.bf16.mxu0 0
    %1389 = vmatpush1.bf16.msra.mxu0 0
    %1390 = vmatprep.subr.bf16.mxu0 0
    %1391 = vmatpush1.bf16.msra.mxu0 %v869
    %1392 = vmatprep.subr.bf16.mxu0 0
    %1393 = vmatpush1.bf16.msra.mxu0 %v868
    %1394 = vmatprep.subr.bf16.mxu0 0
    %1395 = vmatpush2.bf16.msra.mxu0 0
    %1396 = vmatprep.subr.bf16.mxu0 0
    %1397 = vmatpush2.bf16.msra.mxu0 0
    %1398 = vmatprep.subr.bf16.mxu0 0
    %1399 = vmatpush2.bf16.msra.mxu0 0
    %1400 = vmatprep.subr.bf16.mxu0 0
    %1401 = vmatpush2.bf16.msra.mxu0 0
    %1402 = vmatprep.subr.bf16.mxu0 0
    %1403 = vmatpush2.bf16.msra.mxu0 0
    %1404 = vmatprep.subr.bf16.mxu0 0
    %1405 = vmatpush2.bf16.msra.mxu0 0
    %1406 = vmatprep.subr.bf16.mxu0 0
    %1407 = vmatpush2.bf16.msra.mxu0 0
    %1408 = vmatprep.subr.bf16.mxu0 0
    %1409 = vmatpush2.bf16.msra.mxu0 0
    %1410 = vmatprep.mubr.bf16.mxu0 0
    %1411 = vmatmul.mubr.bf16.gmra.mxu0 %v1376
    %v1412 = vpop.f32.mrf.mxu0
    %v1413 = vadd.f32 0.0, %v1412
    %v1414 = vpop.f32.mrf.mxu0
    %v1415 = vpop.f32.mrf.mxu0
    %v1416 = vpop.f32.mrf.mxu0
    %1417 = vdwg.mxu0
    %v1418 = vadd.f32 %v860, %v1413
    %v1419 = vxor.u32 %v1418, 2147483648
    %v1420 = vmul.f32 %v1419, 1.442695
    %v1421 = vpow.pop %v1420
    %v1422 = vadd.f32 %v1421, 1.0
    %v1423 = vrcp.pop %v1422
    %v1424 = vmul.f32 1.0, %v1423
    %v1425 = vtanh.pop %v1418
    %v1426 = vmul.f32 %v1424, %v1364
    %1428 = vrot.lane.b32.xlu0 %v1425, 64
    %v1429 = vpop.permute.xlu0 %1428
    %v1431 = vmul.f32 %v1424, %v1429
    %1433 = vrot.lane.b32.xlu0 %v1431, 32
    %v1434 = vpop.permute.xlu0 %1433
    %v1436 = vadd.f32 %v1426, %v1434
    %v1437 = vtanh.pop %v1436
    %1439 = vrot.lane.b32.xlu0 %v1437, 64
    %v1440 = vpop.permute.xlu0 %1439
    %v1442 = vmul.f32 %v1424, %v1440
    %v1443 = vxor.u32 %v862, 2147483648
    %v1444 = vmul.f32 %v1443, 1.442695
    %v1445 = vpow.pop %v1444
    %v1446 = vadd.f32 %v1445, 1.0
    %v1447 = vrcp.pop %v1446
    %v1448 = vmul.f32 1.0, %v1447
    %v1449 = vtanh.pop %v862
    %1451 = vrot.lane.b32.xlu0 %v1449, 64
    %v1452 = vpop.permute.xlu0 %1451
    %v1454 = vmul.f32 %v1448, %v1452
    %v1455 = vtanh.pop %v1454
    %1457 = vrot.lane.b32.xlu0 %v1455, 96
    %v1458 = vpop.permute.xlu0 %1457
    %v1460 = vmul.f32 %v1448, %v1458
    %v1461 = vld [vmem:[#allocation2 + $0x620] ss:$0 sm:$0xff]
    %v1462 = vld [vmem:[#allocation2 + $0x630] ss:$0 sm:$0xff]
    %1464 = vrot.lane.b32.xlu0 %v1442, 32
    %v1465 = vpop.permute.xlu0 %1464
    %v1467 = vsel %vm870, %v1465, 0.0
    %1468 = vadd.xlane.f32.xlu0 %v1467
    %v1469 = vpop.xlane.xlu0 %1468
    %1471 = vrot.lane.b32.xlu0 %v1460, 32
    %v1472 = vpop.permute.xlu0 %1471
    %v1474 = vsel %vm870, %v1472, 0.0
    %1475 = vadd.xlane.f32.xlu0 %v1474
    %v1476 = vpop.xlane.xlu0 %1475
    %v1477 = vadd.f32 %v1469, %v1476
    %v1478 = vmul.f32 %v1477, 0.015625
    %v1479 = vsub.f32 %v1442, %v1478
    %v1480 = vsub.f32 %v1460, %v1478
    %v1481 = vmul.f32 %v1479, %v1479
    %1483 = vrot.lane.b32.xlu0 %v1481, 32
    %v1484 = vpop.permute.xlu0 %1483
    %v1486 = vsel %vm870, %v1484, 0.0
    %1487 = vadd.xlane.f32.xlu0 %v1486
    %v1488 = vpop.xlane.xlu0 %1487
    %v1489 = vmul.f32 %v1480, %v1480
    %1491 = vrot.lane.b32.xlu0 %v1489, 32
    %v1492 = vpop.permute.xlu0 %1491
    %v1494 = vsel %vm870, %v1492, 0.0
    %1495 = vadd.xlane.f32.xlu0 %v1494
    %v1496 = vpop.xlane.xlu0 %1495
    %v1497 = vadd.f32 %v1488, %v1496
    %v1498 = vmul.f32 %v1497, 0.015625
    %v1499 = vadd.f32 %v1498, 1e-05
    %v1500 = vrsqrt.pop %v1499
    %v1501 = vmul.f32 %v1479, %v1500
    %1503 = vrot.lane.b32.xlu0 %v1461, 96
    %v1504 = vpop.permute.xlu0 %1503
    %v1506 = vmul.f32 %v1501, %v1504
    %1508 = vrot.lane.b32.xlu0 %v1462, 96
    %v1509 = vpop.permute.xlu0 %1508
    %v1511 = vadd.f32 %v1506, %v1509
    %v1512 = vmul.f32 %v1480, %v1500
    %1513 = vrot.lane.b32.xlu0 %v1461, 64
    %v1514 = vpop.permute.xlu0 %1513
    %v1516 = vmul.f32 %v1512, %v1514
    %1517 = vrot.lane.b32.xlu0 %v1462, 64
    %v1518 = vpop.permute.xlu0 %1517
    %v1520 = vadd.f32 %v1516, %v1518
    %v1521 = vld [vmem:[#allocation2 + $0x330] sm:$0xff]
    %v1522 = vld [vmem:[#allocation2 + $0x338] sm:$0xff]
    %v1523 = vld [vmem:[#allocation2 + $0x340] sm:$0xff]
    %v1524 = vld [vmem:[#allocation2 + $0x348] sm:$0xff]
    %v1525 = vld [vmem:[#allocation2 + $0x350] sm:$0xff]
    %v1526 = vld [vmem:[#allocation2 + $0x358] sm:$0xff]
    %v1527 = vld [vmem:[#allocation2 + $0x360] sm:$0xff]
    %v1528 = vld [vmem:[#allocation2 + $0x368] sm:$0xff]
    %v1529 = vld [vmem:[#allocation2 + $0x370] sm:$0xff]
    %v1530 = vld [vmem:[#allocation2 + $0x378] sm:$0xff]
    %v1531 = vld [vmem:[#allocation2 + $0x380] sm:$0xff]
    %v1532 = vld [vmem:[#allocation2 + $0x388] sm:$0xff]
    %v1533 = vld [vmem:[#allocation2 + $0x390] sm:$0xff]
    %v1534 = vld [vmem:[#allocation2 + $0x398] sm:$0xff]
    %v1535 = vld [vmem:[#allocation2 + $0x3a0] sm:$0xff]
    %v1536 = vld [vmem:[#allocation2 + $0x3a8] sm:$0xff]
    %1538 = vrot.lane.b32.xlu0 %v1511, 32
    %v1539 = vpop.permute.xlu0 %1538
    %v1540 = vsel %vm870, %v1539, 0
    %1542 = vmatprep.subr.mxu0 0.0
    %1543 = vmatpush1.msra.mxu0 0.0
    %1544 = vmatprep.subr.mxu0 0.0
    %1545 = vmatpush1.msra.mxu0 0.0
    %1546 = vmatprep.subr.mxu0 0.0
    %1547 = vmatpush1.msra.mxu0 0.0
    %1548 = vmatprep.subr.mxu0 0.0
    %1549 = vmatpush1.msra.mxu0 0.0
    %1550 = vmatprep.subr.mxu0 0.0
    %1551 = vmatpush1.msra.mxu0 0.0
    %1552 = vmatprep.subr.mxu0 0.0
    %1553 = vmatpush1.msra.mxu0 0.0
    %1554 = vmatprep.subr.mxu0 0.0
    %1555 = vmatpush1.msra.mxu0 0.0
    %1556 = vmatprep.subr.mxu0 0.0
    %1557 = vmatpush1.msra.mxu0 0.0
    %1558 = vmatprep.subr.mxu0 0.0
    %1559 = vmatpush1.msra.mxu0 0.0
    %1560 = vmatprep.subr.mxu0 0.0
    %1561 = vmatpush1.msra.mxu0 0.0
    %1562 = vmatprep.subr.mxu0 0.0
    %1563 = vmatpush1.msra.mxu0 0.0
    %1564 = vmatprep.subr.mxu0 0.0
    %1565 = vmatpush1.msra.mxu0 0.0
    %1566 = vmatprep.subr.mxu0 %v1536
    %1567 = vmatpush1.msra.mxu0 %v1535
    %1568 = vmatprep.subr.mxu0 %v1534
    %1569 = vmatpush1.msra.mxu0 %v1533
    %1570 = vmatprep.subr.mxu0 %v1532
    %1571 = vmatpush1.msra.mxu0 %v1531
    %1572 = vmatprep.subr.mxu0 %v1530
    %1573 = vmatpush1.msra.mxu0 %v1529
    %1574 = vmatprep.subr.mxu0 0.0
    %1575 = vmatpush2.msra.mxu0 0.0
    %1576 = vmatprep.subr.mxu0 0.0
    %1577 = vmatpush2.msra.mxu0 0.0
    %1578 = vmatprep.subr.mxu0 0.0
    %1579 = vmatpush2.msra.mxu0 0.0
    %1580 = vmatprep.subr.mxu0 0.0
    %1581 = vmatpush2.msra.mxu0 0.0
    %1582 = vmatprep.subr.mxu0 0.0
    %1583 = vmatpush2.msra.mxu0 0.0
    %1584 = vmatprep.subr.mxu0 0.0
    %1585 = vmatpush2.msra.mxu0 0.0
    %1586 = vmatprep.subr.mxu0 0.0
    %1587 = vmatpush2.msra.mxu0 0.0
    %1588 = vmatprep.subr.mxu0 0.0
    %1589 = vmatpush2.msra.mxu0 0.0
    %1590 = vmatprep.subr.mxu0 0.0
    %1591 = vmatpush2.msra.mxu0 0.0
    %1592 = vmatprep.subr.mxu0 0.0
    %1593 = vmatpush2.msra.mxu0 0.0
    %1594 = vmatprep.subr.mxu0 0.0
    %1595 = vmatpush2.msra.mxu0 0.0
    %1596 = vmatprep.subr.mxu0 0.0
    %1597 = vmatpush2.msra.mxu0 0.0
    %1598 = vmatprep.subr.mxu0 0.0
    %1599 = vmatpush2.msra.mxu0 0.0
    %1600 = vmatprep.subr.mxu0 0.0
    %1601 = vmatpush2.msra.mxu0 0.0
    %1602 = vmatprep.subr.mxu0 0.0
    %1603 = vmatpush2.msra.mxu0 0.0
    %1604 = vmatprep.subr.mxu0 0.0
    %1605 = vmatpush2.msra.mxu0 0.0
    %1606 = vmatprep.mubr.f32.mxu0 0.0
    %1607 = vmatmul.mubr.f32.gmra.mxu0 %v1540
    %v1608 = vpop.f32.mrf.mxu0
    %v1609 = vadd.f32 0.0, %v1608
    %v1610 = vpop.f32.mrf.mxu0
    %v1611 = vadd.f32 0.0, %v1610
    %1612 = vdwg.mxu0
    %v1614 = vsel %vm870, %v486, 0
    %1616 = vmatprep.subr.mxu0 0.0
    %1617 = vmatpush1.msra.mxu0 0.0
    %1618 = vmatprep.subr.mxu0 0.0
    %1619 = vmatpush1.msra.mxu0 0.0
    %1620 = vmatprep.subr.mxu0 0.0
    %1621 = vmatpush1.msra.mxu0 0.0
    %1622 = vmatprep.subr.mxu0 0.0
    %1623 = vmatpush1.msra.mxu0 0.0
    %1624 = vmatprep.subr.mxu0 0.0
    %1625 = vmatpush1.msra.mxu0 0.0
    %1626 = vmatprep.subr.mxu0 0.0
    %1627 = vmatpush1.msra.mxu0 0.0
    %1628 = vmatprep.subr.mxu0 0.0
    %1629 = vmatpush1.msra.mxu0 0.0
    %1630 = vmatprep.subr.mxu0 0.0
    %1631 = vmatpush1.msra.mxu0 0.0
    %1632 = vmatprep.subr.mxu0 0.0
    %1633 = vmatpush1.msra.mxu0 0.0
    %1634 = vmatprep.subr.mxu0 0.0
    %1635 = vmatpush1.msra.mxu0 0.0
    %1636 = vmatprep.subr.mxu0 0.0
    %1637 = vmatpush1.msra.mxu0 0.0
    %1638 = vmatprep.subr.mxu0 0.0
    %1639 = vmatpush1.msra.mxu0 0.0
    %1640 = vmatprep.subr.mxu0 %v1528
    %1641 = vmatpush1.msra.mxu0 %v1527
    %1642 = vmatprep.subr.mxu0 %v1526
    %1643 = vmatpush1.msra.mxu0 %v1525
    %1644 = vmatprep.subr.mxu0 %v1524
    %1645 = vmatpush1.msra.mxu0 %v1523
    %1646 = vmatprep.subr.mxu0 %v1522
    %1647 = vmatpush1.msra.mxu0 %v1521
    %1648 = vmatprep.subr.mxu0 0.0
    %1649 = vmatpush2.msra.mxu0 0.0
    %1650 = vmatprep.subr.mxu0 0.0
    %1651 = vmatpush2.msra.mxu0 0.0
    %1652 = vmatprep.subr.mxu0 0.0
    %1653 = vmatpush2.msra.mxu0 0.0
    %1654 = vmatprep.subr.mxu0 0.0
    %1655 = vmatpush2.msra.mxu0 0.0
    %1656 = vmatprep.subr.mxu0 0.0
    %1657 = vmatpush2.msra.mxu0 0.0
    %1658 = vmatprep.subr.mxu0 0.0
    %1659 = vmatpush2.msra.mxu0 0.0
    %1660 = vmatprep.subr.mxu0 0.0
    %1661 = vmatpush2.msra.mxu0 0.0
    %1662 = vmatprep.subr.mxu0 0.0
    %1663 = vmatpush2.msra.mxu0 0.0
    %1664 = vmatprep.subr.mxu0 0.0
    %1665 = vmatpush2.msra.mxu0 0.0
    %1666 = vmatprep.subr.mxu0 0.0
    %1667 = vmatpush2.msra.mxu0 0.0
    %1668 = vmatprep.subr.mxu0 0.0
    %1669 = vmatpush2.msra.mxu0 0.0
    %1670 = vmatprep.subr.mxu0 0.0
    %1671 = vmatpush2.msra.mxu0 0.0
    %1672 = vmatprep.subr.mxu0 0.0
    %1673 = vmatpush2.msra.mxu0 0.0
    %1674 = vmatprep.subr.mxu0 0.0
    %1675 = vmatpush2.msra.mxu0 0.0
    %1676 = vmatprep.subr.mxu0 0.0
    %1677 = vmatpush2.msra.mxu0 0.0
    %1678 = vmatprep.subr.mxu0 0.0
    %1679 = vmatpush2.msra.mxu0 0.0
    %1680 = vmatprep.mubr.f32.mxu0 0.0
    %1681 = vmatmul.mubr.f32.gmra.mxu0 %v1614
    %v1682 = vpop.f32.mrf.mxu0
    %v1683 = vadd.f32 %v1609, %v1682
    %v1684 = vpop.f32.mrf.mxu0
    %v1685 = vadd.f32 %v1611, %v1684
    %1686 = vdwg.mxu0
    %v1687 = vld [vmem:[#allocation2 + $0x3b0] sm:$0xff]
    %v1688 = vld [vmem:[#allocation2 + $0x3b8] sm:$0xff]
    %v1689 = vld [vmem:[#allocation2 + $0x3c0] sm:$0xff]
    %v1690 = vld [vmem:[#allocation2 + $0x3c8] sm:$0xff]
    %v1691 = vld [vmem:[#allocation2 + $0x3d0] sm:$0xff]
    %v1692 = vld [vmem:[#allocation2 + $0x3d8] sm:$0xff]
    %v1693 = vld [vmem:[#allocation2 + $0x3e0] sm:$0xff]
    %v1694 = vld [vmem:[#allocation2 + $0x3e8] sm:$0xff]
    %1696 = vrot.lane.b32.xlu0 %v1520, 32
    %v1697 = vpop.permute.xlu0 %1696
    %v1698 = vsel %vm870, %v1697, 0
    %1700 = vmatprep.subr.mxu0 0.0
    %1701 = vmatpush1.msra.mxu0 0.0
    %1702 = vmatprep.subr.mxu0 0.0
    %1703 = vmatpush1.msra.mxu0 0.0
    %1704 = vmatprep.subr.mxu0 0.0
    %1705 = vmatpush1.msra.mxu0 0.0
    %1706 = vmatprep.subr.mxu0 0.0
    %1707 = vmatpush1.msra.mxu0 0.0
    %1708 = vmatprep.subr.mxu0 0.0
    %1709 = vmatpush1.msra.mxu0 0.0
    %1710 = vmatprep.subr.mxu0 0.0
    %1711 = vmatpush1.msra.mxu0 0.0
    %1712 = vmatprep.subr.mxu0 0.0
    %1713 = vmatpush1.msra.mxu0 0.0
    %1714 = vmatprep.subr.mxu0 0.0
    %1715 = vmatpush1.msra.mxu0 0.0
    %1716 = vmatprep.subr.mxu0 0.0
    %1717 = vmatpush1.msra.mxu0 0.0
    %1718 = vmatprep.subr.mxu0 0.0
    %1719 = vmatpush1.msra.mxu0 0.0
    %1720 = vmatprep.subr.mxu0 0.0
    %1721 = vmatpush1.msra.mxu0 0.0
    %1722 = vmatprep.subr.mxu0 0.0
    %1723 = vmatpush1.msra.mxu0 0.0
    %1724 = vmatprep.subr.mxu0 %v1694
    %1725 = vmatpush1.msra.mxu0 %v1693
    %1726 = vmatprep.subr.mxu0 %v1692
    %1727 = vmatpush1.msra.mxu0 %v1691
    %1728 = vmatprep.subr.mxu0 %v1690
    %1729 = vmatpush1.msra.mxu0 %v1689
    %1730 = vmatprep.subr.mxu0 %v1688
    %1731 = vmatpush1.msra.mxu0 %v1687
    %1732 = vmatprep.subr.mxu0 0.0
    %1733 = vmatpush2.msra.mxu0 0.0
    %1734 = vmatprep.subr.mxu0 0.0
    %1735 = vmatpush2.msra.mxu0 0.0
    %1736 = vmatprep.subr.mxu0 0.0
    %1737 = vmatpush2.msra.mxu0 0.0
    %1738 = vmatprep.subr.mxu0 0.0
    %1739 = vmatpush2.msra.mxu0 0.0
    %1740 = vmatprep.subr.mxu0 0.0
    %1741 = vmatpush2.msra.mxu0 0.0
    %1742 = vmatprep.subr.mxu0 0.0
    %1743 = vmatpush2.msra.mxu0 0.0
    %1744 = vmatprep.subr.mxu0 0.0
    %1745 = vmatpush2.msra.mxu0 0.0
    %1746 = vmatprep.subr.mxu0 0.0
    %1747 = vmatpush2.msra.mxu0 0.0
    %1748 = vmatprep.subr.mxu0 0.0
    %1749 = vmatpush2.msra.mxu0 0.0
    %1750 = vmatprep.subr.mxu0 0.0
    %1751 = vmatpush2.msra.mxu0 0.0
    %1752 = vmatprep.subr.mxu0 0.0
    %1753 = vmatpush2.msra.mxu0 0.0
    %1754 = vmatprep.subr.mxu0 0.0
    %1755 = vmatpush2.msra.mxu0 0.0
    %1756 = vmatprep.subr.mxu0 0.0
    %1757 = vmatpush2.msra.mxu0 0.0
    %1758 = vmatprep.subr.mxu0 0.0
    %1759 = vmatpush2.msra.mxu0 0.0
    %1760 = vmatprep.subr.mxu0 0.0
    %1761 = vmatpush2.msra.mxu0 0.0
    %1762 = vmatprep.subr.mxu0 0.0
    %1763 = vmatpush2.msra.mxu0 0.0
    %1764 = vmatprep.mubr.f32.mxu0 0.0
    %1765 = vmatmul.mubr.f32.gmra.mxu0 %v1698
    %v1766 = vpop.f32.mrf.mxu0
    %v1767 = vadd.f32 0.0, %v1766
    %v1768 = vpop.f32.mrf.mxu0
    %v1769 = vadd.f32 0.0, %v1768
    %1770 = vdwg.mxu0
    %v1771 = vadd.f32 %v1683, %v1767
    %v1772 = vadd.f32 %v1685, %v1769
    %s1773 = scalar_lea.vmem [#allocation2], 1600
    %v1774 = vld [vmem:[%s1773] ss:$8 sm:$0x3]
    %v1776 = vlaneseq
    %v1777 = vshrl.u32 %v1776, 7
    %v1778 = vsub.s32 0, %v1777
    %v1779 = vrot.slane %v1774, %v1778
    %v1780 = vlaneseq
    %v1781 = vshrl.u32 %v1780, 7
    %v1782 = vsub.s32 1, %v1781
    %v1783 = vrot.slane %v1774, %v1782
    %v1786 = vadd.f32 %v1771, %v1779
    %v1787 = vadd.f32 %v1772, %v1783
    %v1788 = vmax.f32 %v1786, 0.0
    %v1789 = vmax.f32 %v1787, 0.0
    %v1790 = vld [vmem:[#allocation2 + $0x3f0] sm:$0xff]
    %v1791 = vld [vmem:[#allocation2 + $0x400] sm:$0xff]
    %v1792 = vld [vmem:[#allocation2 + $0x410] sm:$0xff]
    %v1793 = vld [vmem:[#allocation2 + $0x420] sm:$0xff]
    %v1794 = vld [vmem:[#allocation2 + $0x430] sm:$0xff]
    %v1795 = vld [vmem:[#allocation2 + $0x440] sm:$0xff]
    %v1796 = vld [vmem:[#allocation2 + $0x450] sm:$0xff]
    %v1797 = vld [vmem:[#allocation2 + $0x460] sm:$0xff]
    %v1798 = vld [vmem:[#allocation2 + $0x470] sm:$0xff]
    %v1799 = vld [vmem:[#allocation2 + $0x480] sm:$0xff]
    %v1800 = vld [vmem:[#allocation2 + $0x490] sm:$0xff]
    %v1801 = vld [vmem:[#allocation2 + $0x4a0] sm:$0xff]
    %v1802 = vld [vmem:[#allocation2 + $0x4b0] sm:$0xff]
    %v1803 = vld [vmem:[#allocation2 + $0x4c0] sm:$0xff]
    %v1804 = vld [vmem:[#allocation2 + $0x4d0] sm:$0xff]
    %v1805 = vld [vmem:[#allocation2 + $0x4e0] sm:$0xff]
    %v1806 = vld [vmem:[#allocation2 + $0x4f0] sm:$0xff]
    %v1807 = vld [vmem:[#allocation2 + $0x500] sm:$0xff]
    %v1808 = vld [vmem:[#allocation2 + $0x510] sm:$0xff]
    %v1809 = vld [vmem:[#allocation2 + $0x520] sm:$0xff]
    %v1810 = vld [vmem:[#allocation2 + $0x530] sm:$0xff]
    %v1811 = vld [vmem:[#allocation2 + $0x540] sm:$0xff]
    %v1812 = vld [vmem:[#allocation2 + $0x550] sm:$0xff]
    %v1813 = vld [vmem:[#allocation2 + $0x560] sm:$0xff]
    %v1814 = vld [vmem:[#allocation2 + $0x570] sm:$0xff]
    %v1815 = vld [vmem:[#allocation2 + $0x580] sm:$0xff]
    %v1816 = vld [vmem:[#allocation2 + $0x590] sm:$0xff]
    %v1817 = vld [vmem:[#allocation2 + $0x5a0] sm:$0xff]
    %v1818 = vld [vmem:[#allocation2 + $0x5b0] sm:$0xff]
    %v1819 = vld [vmem:[#allocation2 + $0x5c0] sm:$0xff]
    %v1820 = vld [vmem:[#allocation2 + $0x5d0] sm:$0xff]
    %v1821 = vld [vmem:[#allocation2 + $0x5e0] sm:$0xff]
    %v1822 = vld [vmem:[#allocation2 + $0x650] ss:$0 sm:$0xff]
    %1823 = vmatprep.subr.mxu0 0.0
    %1824 = vmatpush1.msra.mxu0 %v1805
    %1825 = vmatprep.subr.mxu0 0.0
    %1826 = vmatpush1.msra.mxu0 %v1804
    %1827 = vmatprep.subr.mxu0 0.0
    %1828 = vmatpush1.msra.mxu0 %v1803
    %1829 = vmatprep.subr.mxu0 0.0
    %1830 = vmatpush1.msra.mxu0 %v1802
    %1831 = vmatprep.subr.mxu0 0.0
    %1832 = vmatpush1.msra.mxu0 %v1801
    %1833 = vmatprep.subr.mxu0 0.0
    %1834 = vmatpush1.msra.mxu0 %v1800
    %1835 = vmatprep.subr.mxu0 0.0
    %1836 = vmatpush1.msra.mxu0 %v1799
    %1837 = vmatprep.subr.mxu0 0.0
    %1838 = vmatpush1.msra.mxu0 %v1798
    %1839 = vmatprep.subr.mxu0 0.0
    %1840 = vmatpush1.msra.mxu0 %v1797
    %1841 = vmatprep.subr.mxu0 0.0
    %1842 = vmatpush1.msra.mxu0 %v1796
    %1843 = vmatprep.subr.mxu0 0.0
    %1844 = vmatpush1.msra.mxu0 %v1795
    %1845 = vmatprep.subr.mxu0 0.0
    %1846 = vmatpush1.msra.mxu0 %v1794
    %1847 = vmatprep.subr.mxu0 0.0
    %1848 = vmatpush1.msra.mxu0 %v1793
    %1849 = vmatprep.subr.mxu0 0.0
    %1850 = vmatpush1.msra.mxu0 %v1792
    %1851 = vmatprep.subr.mxu0 0.0
    %1852 = vmatpush1.msra.mxu0 %v1791
    %1853 = vmatprep.subr.mxu0 0.0
    %1854 = vmatpush1.msra.mxu0 %v1790
    %1855 = vmatprep.subr.mxu0 0.0
    %1856 = vmatpush2.msra.mxu0 %v1821
    %1857 = vmatprep.subr.mxu0 0.0
    %1858 = vmatpush2.msra.mxu0 %v1820
    %1859 = vmatprep.subr.mxu0 0.0
    %1860 = vmatpush2.msra.mxu0 %v1819
    %1861 = vmatprep.subr.mxu0 0.0
    %1862 = vmatpush2.msra.mxu0 %v1818
    %1863 = vmatprep.subr.mxu0 0.0
    %1864 = vmatpush2.msra.mxu0 %v1817
    %1865 = vmatprep.subr.mxu0 0.0
    %1866 = vmatpush2.msra.mxu0 %v1816
    %1867 = vmatprep.subr.mxu0 0.0
    %1868 = vmatpush2.msra.mxu0 %v1815
    %1869 = vmatprep.subr.mxu0 0.0
    %1870 = vmatpush2.msra.mxu0 %v1814
    %1871 = vmatprep.subr.mxu0 0.0
    %1872 = vmatpush2.msra.mxu0 %v1813
    %1873 = vmatprep.subr.mxu0 0.0
    %1874 = vmatpush2.msra.mxu0 %v1812
    %1875 = vmatprep.subr.mxu0 0.0
    %1876 = vmatpush2.msra.mxu0 %v1811
    %1877 = vmatprep.subr.mxu0 0.0
    %1878 = vmatpush2.msra.mxu0 %v1810
    %1879 = vmatprep.subr.mxu0 0.0
    %1880 = vmatpush2.msra.mxu0 %v1809
    %1881 = vmatprep.subr.mxu0 0.0
    %1882 = vmatpush2.msra.mxu0 %v1808
    %1883 = vmatprep.subr.mxu0 0.0
    %1884 = vmatpush2.msra.mxu0 %v1807
    %1885 = vmatprep.subr.mxu0 0.0
    %1886 = vmatpush2.msra.mxu0 %v1806
    %1887 = vmatprep.mubr.f32.mxu0 %v1789
    %1888 = vmatmul.mubr.f32.gmra.mxu0 %v1788
    %v1889 = vpop.f32.mrf.mxu0
    %v1890 = vadd.f32 %v1822, %v1889
    %v1891 = vpop.f32.mrf.mxu0
    %1892 = vdwg.mxu0
    %1893 = vst [vmem:[%s2] sm:$0xff] %v1890
    // Predicated region
    $region14: #{vqa_forward.1} parent=1 // pred_check
      _
    $region15: #{vqa_forward.1} parent=1 // pred_check_branch
      %1895 = sbr.rel (0) target = $region17
    $region16: #{vqa_forward.1} parent=1 // pred_region
      _
    $region17: #{vqa_forward.1} parent=1 // pred_fallthru
      _
    // Predicated region
    $region18: #{vqa_forward.1} parent=1 // pred_check
      _
    $region19: #{vqa_forward.1} parent=1 // pred_check_branch
      %1897 = sbr.rel (0) target = $region21
    $region20: #{vqa_forward.1} parent=1 // pred_region
      _
    $region21: #{vqa_forward.1} parent=1 // pred_fallthru
      _
    %1898 = vsyncpa [#allocation3], 1

</llo_original>
